<compile_context>
chip_gen: v6e
topology: v6e:2x2x1
jax: 0.10.0
libtpu: 0.0.40
codegen_flags: <defaults>
</compile_context>

<pallas_src>
import jax
import jax.numpy as jnp
from jax import lax
from jax.experimental import pallas as pl
from jax.experimental.pallas import tpu as pltpu


# ----------------------------------------------------------------------------
# Fused Pallas kernel (one grid step == one sample)
# ----------------------------------------------------------------------------

def _lenet5_kernel(x_ref, t1_ref, cb1_ref, e14_ref, s1_ref, t2_ref, cb2_ref,
                   e5_ref, s2_ref, fw1_ref, fb1_ref, fw2_ref, fb2_ref,
                   fw3_ref, fb3_ref, o_ref, a1_ref):
    f32 = jnp.float32
    bf16 = jnp.bfloat16

    x = x_ref[0, 0]                                     # (28, 28) current sample, f32

    # ---- conv1 (padding=2) as ONE channel-fused block-Toeplitz GEMM -------------
    # a1 (28, 160): five vertically shifted copies of the zero-padded input laid
    # side-by-side on the lane axis (horizontal pad lives in the zeroed columns).
    a1_ref[...] = jnp.zeros(a1_ref.shape, f32)          # re-init every step (megacore-safe)
    for ki in range(5):
        lo = max(ki, 2)                  # first padded-row index holding real data
        hi = min(ki + 27, 29)            # last
        a1_ref[lo - ki:hi - ki + 1, ki * 32 + 2:ki * 32 + 30] = x[lo - 2:hi - 1, :]
    a1 = a1_ref[...].astype(bf16)                        # (28, 160)
    c1 = jnp.dot(a1, t1_ref[...], preferred_element_type=f32) + cb1_ref[...]
    c1 = jnp.maximum(c1, 0.0)                            # (28, 224): lanes = co*28 + col

    # ---- pool1: channel-fused 2x2 max -> (14, 112) -------------------------------
    r1 = jnp.maximum(c1[0:27, :], c1[1:28, :]).astype(bf16)        # (27, 224)
    ph1 = jnp.dot(e14_ref[...], r1, preferred_element_type=f32)    # (14, 224)
    cm1 = jnp.maximum(ph1[:, 0:223], ph1[:, 1:224]).astype(bf16)   # (14, 223)
    p1 = jnp.dot(cm1, s1_ref[...], preferred_element_type=f32)     # (14, 112): lanes = ci*14 + col

    # ---- conv2 (valid) as a 5-tap banded accumulation (no im2col scratch) --------
    acc = jnp.dot(p1[0:10, :].astype(bf16), t2_ref[0], preferred_element_type=f32)
    for ki in range(1, 5):
        acc = acc + jnp.dot(p1[ki:ki + 10, :].astype(bf16), t2_ref[ki],
                            preferred_element_type=f32)
    c2 = jnp.maximum(acc + cb2_ref[...], 0.0)            # (10, 160): lanes = co*10 + col

    # ---- pool2: channel-fused 2x2 max, emitted directly in the fc1 flatten layout
    r2 = jnp.maximum(c2[0:9, :], c2[1:10, :]).astype(bf16)         # (9, 160)
    ph2 = jnp.dot(e5_ref[...], r2, preferred_element_type=f32)     # (5, 160)
    cm2 = jnp.maximum(ph2[:, 0:159], ph2[:, 1:160]).astype(bf16)   # (5, 159)
    g = jnp.dot(cm2, s2_ref[...], preferred_element_type=f32)      # (5, 80): g[h, co*5+w]

    # ---- classifier: fc1 (one GEMM + diag-block sum) -> fc2 -> fc3 -> log_softmax
    r = jnp.dot(g.astype(bf16), fw1_ref[...], preferred_element_type=f32)  # (5, 640)
    h1 = fb1_ref[...]                                    # (1, 128)
    for h in range(5):
        h1 = h1 + r[h:h + 1, h * 128:(h + 1) * 128]
    h1 = jnp.maximum(h1, 0.0)
    h2 = jnp.maximum(jnp.dot(h1.astype(bf16), fw2_ref[...],
                             preferred_element_type=f32) + fb2_ref[...], 0.0)  # (1, 64)
    logits = jnp.dot(h2.astype(bf16), fw3_ref[...],
                     preferred_element_type=f32) + fb3_ref[...]                # (1, n_classes)
    m = jnp.max(logits, axis=-1, keepdims=True)
    z = logits - m
    lse = jnp.log(jnp.sum(jnp.exp(z), axis=-1, keepdims=True))
    o_ref[0] = (z - lse).astype(o_ref.dtype)


# ----------------------------------------------------------------------------
# Wrapper-side (weight-only) preprocessing
# ----------------------------------------------------------------------------

def _toeplitz_band(w, in_w, out_w):
    """Banded matrices for conv-as-GEMM.

    w: (Cout, Cin, KH, KW) (PyTorch layout).
    Returns (Cout, Cin, KH, in_w, out_w) with
      band[co, ci, ki, c, j] = w[co, ci, ki, c - j] if 0 <= c - j < KW else 0.
    """
    kw = w.shape[3]
    c = jnp.arange(in_w)[:, None]
    j = jnp.arange(out_w)[None, :]
    diff = c - j
    mask = ((diff >= 0) & (diff < kw)).astype(w.dtype)
    taps = jnp.clip(diff, 0, kw - 1)
    return w[:, :, :, taps] * mask[None, None, None]


def _row_selector(h_out):
    """(h_out, 2*h_out - 1) 0/1 matrix: left-multiply picks even rows of a pairwise max."""
    r = jnp.arange(h_out)[:, None]
    c = jnp.arange(2 * h_out - 1)[None, :]
    return (c == 2 * r).astype(jnp.float32)


def _col_selector(n_ch, w_in):
    """Block-diagonal (n_ch*w_in - 1, n_ch*(w_in//2)) 0/1 matrix.

    S[ch*w_in + 2w, ch*(w_in//2) + w] = 1 — right-multiply a channel-fused pairwise
    column max to get the per-channel 2x2-pooled columns (never selects the
    cross-channel boundary pairs).
    """
    w_out = w_in // 2
    r = jnp.arange(n_ch * w_in - 1)[:, None]
    c = jnp.arange(n_ch * w_out)[None, :]
    ch_r, pos_r = r // w_in, r % w_in
    ch_c, pos_c = c // w_out, c % w_out
    return ((ch_r == ch_c) & (pos_r == 2 * pos_c)).astype(jnp.float32)


def lenet5_forward(x, params):
    """x: (B, 1, 28, 28) f32, params in PyTorch layouts.  Returns (B, n_classes)."""
    B = x.shape[0]
    n_classes = params["fc3_w"].shape[0]
    f32, bf16 = jnp.float32, jnp.bfloat16

    # conv1: channel-fused banded Toeplitz, lanes = co*28 + j.
    band1 = _toeplitz_band(params["conv1_w"], in_w=32, out_w=28)    # (8,1,5,32,28)
    t1f = band1[:, 0].transpose(1, 2, 0, 3).reshape(160, 224).astype(bf16)
    cb1 = jnp.repeat(params["conv1_b"], 28).reshape(1, 224).astype(f32)

    # conv2: per-tap banded matrices for the 5-row accumulation, lanes = co*10 + j.
    band2 = _toeplitz_band(params["conv2_w"], in_w=14, out_w=10)    # (16,8,5,14,10)
    t2 = band2.transpose(2, 1, 3, 0, 4).reshape(5, 112, 160).astype(bf16)
    cb2 = jnp.repeat(params["conv2_b"], 10).reshape(1, 160).astype(f32)

    # pool selectors (host-side constants; stay VMEM-resident across the grid).
    e14 = _row_selector(14).astype(bf16)      # (14, 27)
    e5 = _row_selector(5).astype(bf16)        # (5, 9)
    s1 = _col_selector(8, 28).astype(bf16)    # (223, 112)
    s2 = _col_selector(16, 10).astype(bf16)   # (159, 80)

    # fc1 packed as (80, 5*128): column block h holds the weights for flatten row h,
    # matching the in-kernel g layout g[h, co*5 + w] = pooled[co, h, w].
    fw1 = (params["fc1_w"].reshape(128, 16, 5, 5).transpose(2, 1, 3, 0)   # (5,16,5,128)
           .reshape(5, 80, 128).transpose(1, 0, 2).reshape(80, 640).astype(bf16))
    fb1 = params["fc1_b"].reshape(1, 128).astype(f32)
    fw2 = params["fc2_w"].T.astype(bf16)
    fb2 = params["fc2_b"].reshape(1, 64).astype(f32)
    fw3 = params["fc3_w"].T.astype(bf16)
    fb3 = params["fc3_b"].reshape(1, n_classes).astype(f32)

    def full(arr):
        return pl.BlockSpec(tuple(arr.shape), lambda b, _nd=arr.ndim: (0,) * _nd)

    out = pl.pallas_call(
        _lenet5_kernel,
        out_shape=jax.ShapeDtypeStruct((B, 1, n_classes), jnp.float32),
        grid=(B,),
        in_specs=[
            pl.BlockSpec((1, 1, 28, 28), lambda b: (b, 0, 0, 0)),   # x: one sample/step
            full(t1f), full(cb1), full(e14), full(s1),
            full(t2), full(cb2), full(e5), full(s2),
            full(fw1), full(fb1), full(fw2), full(fb2), full(fw3), full(fb3),
        ],
        out_specs=pl.BlockSpec((1, 1, n_classes), lambda b: (b, 0, 0)),
        scratch_shapes=[
            pltpu.VMEM((28, 160), jnp.float32),   # conv1 shifted-rows (im2col) buffer
        ],
        compiler_params=pltpu.CompilerParams(
            dimension_semantics=("parallel",)),   # v7x: shard samples over 2 TCs
    )(x, t1f, cb1, e14, s1, t2, cb2, e5, s2, fw1, fb1, fw2, fb2, fw3, fb3)
    return out[:, 0, :]


# ----------------------------------------------------------------------------
# Pure-JAX reference (PyTorch semantics) for a correctness check
# ----------------------------------------------------------------------------

def lenet5_reference(x, params):
    dn = ("NCHW", "OIHW", "NCHW")
    h = lax.conv_general_dilated(x, params["conv1_w"], (1, 1),
                                 ((2, 2), (2, 2)), dimension_numbers=dn)
    h = jax.nn.relu(h + params["conv1_b"][None, :, None, None])
    h = lax.reduce_window(h, -jnp.inf, lax.max, (1, 1, 2, 2), (1, 1, 2, 2), "VALID")
    h = lax.conv_general_dilated(h, params["conv2_w"], (1, 1),
                                 ((0, 0), (0, 0)), dimension_numbers=dn)
    h = jax.nn.relu(h + params["conv2_b"][None, :, None, None])
    h = lax.reduce_window(h, -jnp.inf, lax.max, (1, 1, 2, 2), (1, 1, 2, 2), "VALID")
    h = h.reshape(h.shape[0], -1)
    h = jax.nn.relu(h @ params["fc1_w"].T + params["fc1_b"])
    h = jax.nn.relu(h @ params["fc2_w"].T + params["fc2_b"])
    logits = h @ params["fc3_w"].T + params["fc3_b"]
    return jax.nn.log_softmax(logits, axis=-1)


def init_params(key, n_classes):
    ks = jax.random.split(key, 10)
    s = 0.1
    return {
        # PyTorch-native layouts
        "conv1_w": s * jax.random.normal(ks[0], (8, 1, 5, 5), jnp.float32),
        "conv1_b": s * jax.random.normal(ks[1], (8,), jnp.float32),
        "conv2_w": s * jax.random.normal(ks[2], (16, 8, 5, 5), jnp.float32),
        "conv2_b": s * jax.random.normal(ks[3], (16,), jnp.float32),
        "fc1_w": s * jax.random.normal(ks[4], (128, 400), jnp.float32),
        "fc1_b": s * jax.random.normal(ks[5], (128,), jnp.float32),
        "fc2_w": s * jax.random.normal(ks[6], (64, 128), jnp.float32),
        "fc2_b": s * jax.random.normal(ks[7], (64,), jnp.float32),
        "fc3_w": s * jax.random.normal(ks[8], (n_classes, 64), jnp.float32),
        "fc3_b": s * jax.random.normal(ks[9], (n_classes,), jnp.float32),
    }


if __name__ == "__main__":
    n_classes = 10
    key = jax.random.PRNGKey(0)
    k_x, k_p = jax.random.split(key)

    # MNIST geometry (28x28, single channel) is required by the 16*5*5 flatten.
    x = jax.random.normal(k_x, (2, 1, 28, 28), jnp.float32)
    params = init_params(k_p, n_classes)

    fwd = jax.jit(lenet5_forward)
    out = fwd(x, params)
    jax.block_until_ready(out)

    ref = jax.jit(lenet5_reference)(x, params)
    jax.block_until_ready(ref)

    assert out.shape == (2, n_classes)
    # log-softmax rows must normalize to 1 in prob space
    assert jnp.allclose(jnp.sum(jnp.exp(out), axis=-1), 1.0, atol=1e-3)
    # match the f32 reference; tolerance tightened vs v1 (0.15 -> 4e-2), sized for
    # bf16 GEMM operands with f32 accumulation across the 5-layer chain.
    max_diff = jnp.max(jnp.abs(out - ref))
    assert max_diff < 4e-2, f"kernel/reference mismatch: {max_diff}"
    print("KERNEL_OK")
</pallas_src>

<mosaic_0001>
module attributes {stable_mosaic.version = 11 : i64} {
  func.func @_lenet5_kernel(%arg0: i32, %arg1: memref<1x1x28x28xf32, #tpu.memory_space<vmem>>, %arg2: memref<160x224xbf16, #tpu.memory_space<vmem>>, %arg3: memref<1x224xf32, #tpu.memory_space<vmem>>, %arg4: memref<14x27xbf16, #tpu.memory_space<vmem>>, %arg5: memref<223x112xbf16, #tpu.memory_space<vmem>>, %arg6: memref<5x112x160xbf16, #tpu.memory_space<vmem>>, %arg7: memref<1x160xf32, #tpu.memory_space<vmem>>, %arg8: memref<5x9xbf16, #tpu.memory_space<vmem>>, %arg9: memref<159x80xbf16, #tpu.memory_space<vmem>>, %arg10: memref<80x640xbf16, #tpu.memory_space<vmem>>, %arg11: memref<1x128xf32, #tpu.memory_space<vmem>>, %arg12: memref<128x64xbf16, #tpu.memory_space<vmem>>, %arg13: memref<1x64xf32, #tpu.memory_space<vmem>>, %arg14: memref<64x10xbf16, #tpu.memory_space<vmem>>, %arg15: memref<1x10xf32, #tpu.memory_space<vmem>>, %arg16: memref<1x1x10xf32, #tpu.memory_space<vmem>>, %arg17: memref<28x160xf32, #tpu.memory_space<vmem>>) attributes {dimension_semantics = [#tpu.dimension_semantics<parallel>], iteration_bounds = array<i64: 2>, scalar_prefetch = 0 : i64, scratch_operands = 1 : i64, tpu.core_type = #tpu.core_type<tc>, window_params = [{transform_indices = @transform_0, window_bounds = array<i64: 1, 1, 28, 28>}, {pipeline_mode = #tpu.pipeline_mode<synchronous>, transform_indices = @transform_1, window_bounds = array<i64: 160, 224>}, {pipeline_mode = #tpu.pipeline_mode<synchronous>, transform_indices = @transform_2, window_bounds = array<i64: 1, 224>}, {pipeline_mode = #tpu.pipeline_mode<synchronous>, transform_indices = @transform_3, window_bounds = array<i64: 14, 27>}, {pipeline_mode = #tpu.pipeline_mode<synchronous>, transform_indices = @transform_4, window_bounds = array<i64: 223, 112>}, {pipeline_mode = #tpu.pipeline_mode<synchronous>, transform_indices = @transform_5, window_bounds = array<i64: 5, 112, 160>}, {pipeline_mode = #tpu.pipeline_mode<synchronous>, transform_indices = @transform_6, window_bounds = array<i64: 1, 160>}, {pipeline_mode = #tpu.pipeline_mode<synchronous>, transform_indices = @transform_7, window_bounds = array<i64: 5, 9>}, {pipeline_mode = #tpu.pipeline_mode<synchronous>, transform_indices = @transform_8, window_bounds = array<i64: 159, 80>}, {pipeline_mode = #tpu.pipeline_mode<synchronous>, transform_indices = @transform_9, window_bounds = array<i64: 80, 640>}, {pipeline_mode = #tpu.pipeline_mode<synchronous>, transform_indices = @transform_10, window_bounds = array<i64: 1, 128>}, {pipeline_mode = #tpu.pipeline_mode<synchronous>, transform_indices = @transform_11, window_bounds = array<i64: 128, 64>}, {pipeline_mode = #tpu.pipeline_mode<synchronous>, transform_indices = @transform_12, window_bounds = array<i64: 1, 64>}, {pipeline_mode = #tpu.pipeline_mode<synchronous>, transform_indices = @transform_13, window_bounds = array<i64: 64, 10>}, {pipeline_mode = #tpu.pipeline_mode<synchronous>, transform_indices = @transform_14, window_bounds = array<i64: 1, 10>}, {transform_indices = @transform_15, window_bounds = array<i64: 1, 1, 10>}]} {
    %c0 = arith.constant 0 : index
    %c0_0 = arith.constant 0 : index
    %c0_1 = arith.constant 0 : index
    %c0_2 = arith.constant 0 : index
    %0 = vector.load %arg1[%c0, %c0_0, %c0_1, %c0_2] : memref<1x1x28x28xf32, #tpu.memory_space<vmem>>, vector<1x1x28x28xf32>
    %1 = vector.shape_cast %0 : vector<1x1x28x28xf32> to vector<28x28xf32>
    %cst = arith.constant 0.000000e+00 : f32
    %2 = vector.broadcast %cst : f32 to vector<28x160xf32>
    %c0_3 = arith.constant 0 : index
    %c0_4 = arith.constant 0 : index
    %3 = vector.load %arg17[%c0_3, %c0_4] : memref<28x160xf32, #tpu.memory_space<vmem>>, vector<28x160xf32>
    tpu.vector_store %arg17[%c0_3, %c0_4], %2 {strides = array<i32>} : memref<28x160xf32, #tpu.memory_space<vmem>>, vector<28x160xf32>,
    %4 = vector.extract_strided_slice %1 {offsets = [0, 0], sizes = [26, 28], strides = [1, 1]} : vector<28x28xf32> to vector<26x28xf32>
    %c2 = arith.constant 2 : index
    %c2_5 = arith.constant 2 : index
    %5 = vector.load %arg17[%c2, %c2_5] : memref<28x160xf32, #tpu.memory_space<vmem>>, vector<26x28xf32>
    tpu.vector_store %arg17[%c2, %c2_5], %4 {strides = array<i32>} : memref<28x160xf32, #tpu.memory_space<vmem>>, vector<26x28xf32>,
    %6 = vector.extract_strided_slice %1 {offsets = [0, 0], sizes = [27, 28], strides = [1, 1]} : vector<28x28xf32> to vector<27x28xf32>
    %c1 = arith.constant 1 : index
    %c34 = arith.constant 34 : index
    %7 = vector.load %arg17[%c1, %c34] : memref<28x160xf32, #tpu.memory_space<vmem>>, vector<27x28xf32>
    tpu.vector_store %arg17[%c1, %c34], %6 {strides = array<i32>} : memref<28x160xf32, #tpu.memory_space<vmem>>, vector<27x28xf32>,
    %c0_6 = arith.constant 0 : index
    %c66 = arith.constant 66 : index
    %8 = vector.load %arg17[%c0_6, %c66] : memref<28x160xf32, #tpu.memory_space<vmem>>, vector<28x28xf32>
    tpu.vector_store %arg17[%c0_6, %c66], %1 {strides = array<i32>} : memref<28x160xf32, #tpu.memory_space<vmem>>, vector<28x28xf32>,
    %9 = vector.extract_strided_slice %1 {offsets = [1, 0], sizes = [27, 28], strides = [1, 1]} : vector<28x28xf32> to vector<27x28xf32>
    %c0_7 = arith.constant 0 : index
    %c98 = arith.constant 98 : index
    %10 = vector.load %arg17[%c0_7, %c98] : memref<28x160xf32, #tpu.memory_space<vmem>>, vector<27x28xf32>
    tpu.vector_store %arg17[%c0_7, %c98], %9 {strides = array<i32>} : memref<28x160xf32, #tpu.memory_space<vmem>>, vector<27x28xf32>,
    %11 = vector.extract_strided_slice %1 {offsets = [2, 0], sizes = [26, 28], strides = [1, 1]} : vector<28x28xf32> to vector<26x28xf32>
    %c0_8 = arith.constant 0 : index
    %c130 = arith.constant 130 : index
    %12 = vector.load %arg17[%c0_8, %c130] : memref<28x160xf32, #tpu.memory_space<vmem>>, vector<26x28xf32>
    tpu.vector_store %arg17[%c0_8, %c130], %11 {strides = array<i32>} : memref<28x160xf32, #tpu.memory_space<vmem>>, vector<26x28xf32>,
    %c0_9 = arith.constant 0 : index
    %c0_10 = arith.constant 0 : index
    %13 = vector.load %arg17[%c0_9, %c0_10] : memref<28x160xf32, #tpu.memory_space<vmem>>, vector<28x160xf32>
    %14 = arith.truncf %13 : vector<28x160xf32> to vector<28x160xbf16>
    %c0_11 = arith.constant 0 : index
    %c0_12 = arith.constant 0 : index
    %15 = vector.load %arg2[%c0_11, %c0_12] : memref<160x224xbf16, #tpu.memory_space<vmem>>, vector<160x224xbf16>
    %cst_13 = arith.constant dense<0.000000e+00> : vector<28x224xf32>
    %16 = tpu.matmul %14, %15, %cst_13 {dimension_numbers = #tpu.dot_dimension_numbers<[1], [0], [0], [1], [0, 0, 1, 1], [], []>} : vector<28x160xbf16>, vector<160x224xbf16>, vector<28x224xf32> -> vector<28x224xf32>
    %c0_14 = arith.constant 0 : index
    %c0_15 = arith.constant 0 : index
    %17 = vector.load %arg3[%c0_14, %c0_15] : memref<1x224xf32, #tpu.memory_space<vmem>>, vector<1x224xf32>
    %18 = vector.broadcast %17 : vector<1x224xf32> to vector<28x224xf32>
    %19 = arith.addf %16, %18 : vector<28x224xf32>
    %cst_16 = arith.constant 0.000000e+00 : f32
    %20 = vector.broadcast %cst_16 : f32 to vector<28x224xf32>
    %21 = arith.maximumf %19, %20 : vector<28x224xf32>
    %22 = vector.extract_strided_slice %21 {offsets = [0, 0], sizes = [27, 224], strides = [1, 1]} : vector<28x224xf32> to vector<27x224xf32>
    %23 = vector.extract_strided_slice %21 {offsets = [1, 0], sizes = [27, 224], strides = [1, 1]} : vector<28x224xf32> to vector<27x224xf32>
    %24 = arith.maximumf %22, %23 : vector<27x224xf32>
    %25 = arith.truncf %24 : vector<27x224xf32> to vector<27x224xbf16>
    %c0_17 = arith.constant 0 : index
    %c0_18 = arith.constant 0 : index
    %26 = vector.load %arg4[%c0_17, %c0_18] : memref<14x27xbf16, #tpu.memory_space<vmem>>, vector<14x27xbf16>
    %cst_19 = arith.constant dense<0.000000e+00> : vector<14x224xf32>
    %27 = tpu.matmul %26, %25, %cst_19 {dimension_numbers = #tpu.dot_dimension_numbers<[1], [0], [0], [1], [0, 0, 1, 1], [], []>} : vector<14x27xbf16>, vector<27x224xbf16>, vector<14x224xf32> -> vector<14x224xf32>
    %28 = vector.extract_strided_slice %27 {offsets = [0, 0], sizes = [14, 223], strides = [1, 1]} : vector<14x224xf32> to vector<14x223xf32>
    %29 = vector.extract_strided_slice %27 {offsets = [0, 1], sizes = [14, 223], strides = [1, 1]} : vector<14x224xf32> to vector<14x223xf32>
    %30 = arith.maximumf %28, %29 : vector<14x223xf32>
    %31 = arith.truncf %30 : vector<14x223xf32> to vector<14x223xbf16>
    %c0_20 = arith.constant 0 : index
    %c0_21 = arith.constant 0 : index
    %32 = vector.load %arg5[%c0_20, %c0_21] : memref<223x112xbf16, #tpu.memory_space<vmem>>, vector<223x112xbf16>
    %cst_22 = arith.constant dense<0.000000e+00> : vector<14x112xf32>
    %33 = tpu.matmul %31, %32, %cst_22 {dimension_numbers = #tpu.dot_dimension_numbers<[1], [0], [0], [1], [0, 0, 1, 1], [], []>} : vector<14x223xbf16>, vector<223x112xbf16>, vector<14x112xf32> -> vector<14x112xf32>
    %34 = vector.extract_strided_slice %33 {offsets = [0, 0], sizes = [10, 112], strides = [1, 1]} : vector<14x112xf32> to vector<10x112xf32>
    %35 = arith.truncf %34 : vector<10x112xf32> to vector<10x112xbf16>
    %c0_23 = arith.constant 0 : index
    %c0_24 = arith.constant 0 : index
    %c0_25 = arith.constant 0 : index
    %36 = vector.load %arg6[%c0_23, %c0_24, %c0_25] : memref<5x112x160xbf16, #tpu.memory_space<vmem>>, vector<1x112x160xbf16>
    %37 = vector.shape_cast %36 : vector<1x112x160xbf16> to vector<112x160xbf16>
    %cst_26 = arith.constant dense<0.000000e+00> : vector<10x160xf32>
    %38 = tpu.matmul %35, %37, %cst_26 {dimension_numbers = #tpu.dot_dimension_numbers<[1], [0], [0], [1], [0, 0, 1, 1], [], []>} : vector<10x112xbf16>, vector<112x160xbf16>, vector<10x160xf32> -> vector<10x160xf32>
    %39 = vector.extract_strided_slice %33 {offsets = [1, 0], sizes = [10, 112], strides = [1, 1]} : vector<14x112xf32> to vector<10x112xf32>
    %40 = arith.truncf %39 : vector<10x112xf32> to vector<10x112xbf16>
    %c1_27 = arith.constant 1 : index
    %c0_28 = arith.constant 0 : index
    %c0_29 = arith.constant 0 : index
    %41 = vector.load %arg6[%c1_27, %c0_28, %c0_29] : memref<5x112x160xbf16, #tpu.memory_space<vmem>>, vector<1x112x160xbf16>
    %42 = vector.shape_cast %41 : vector<1x112x160xbf16> to vector<112x160xbf16>
    %cst_30 = arith.constant dense<0.000000e+00> : vector<10x160xf32>
    %43 = tpu.matmul %40, %42, %cst_30 {dimension_numbers = #tpu.dot_dimension_numbers<[1], [0], [0], [1], [0, 0, 1, 1], [], []>} : vector<10x112xbf16>, vector<112x160xbf16>, vector<10x160xf32> -> vector<10x160xf32>
    %44 = arith.addf %38, %43 : vector<10x160xf32>
    %45 = vector.extract_strided_slice %33 {offsets = [2, 0], sizes = [10, 112], strides = [1, 1]} : vector<14x112xf32> to vector<10x112xf32>
    %46 = arith.truncf %45 : vector<10x112xf32> to vector<10x112xbf16>
    %c2_31 = arith.constant 2 : index
    %c0_32 = arith.constant 0 : index
    %c0_33 = arith.constant 0 : index
    %47 = vector.load %arg6[%c2_31, %c0_32, %c0_33] : memref<5x112x160xbf16, #tpu.memory_space<vmem>>, vector<1x112x160xbf16>
    %48 = vector.shape_cast %47 : vector<1x112x160xbf16> to vector<112x160xbf16>
    %cst_34 = arith.constant dense<0.000000e+00> : vector<10x160xf32>
    %49 = tpu.matmul %46, %48, %cst_34 {dimension_numbers = #tpu.dot_dimension_numbers<[1], [0], [0], [1], [0, 0, 1, 1], [], []>} : vector<10x112xbf16>, vector<112x160xbf16>, vector<10x160xf32> -> vector<10x160xf32>
    %50 = arith.addf %44, %49 : vector<10x160xf32>
    %51 = vector.extract_strided_slice %33 {offsets = [3, 0], sizes = [10, 112], strides = [1, 1]} : vector<14x112xf32> to vector<10x112xf32>
    %52 = arith.truncf %51 : vector<10x112xf32> to vector<10x112xbf16>
    %c3 = arith.constant 3 : index
    %c0_35 = arith.constant 0 : index
    %c0_36 = arith.constant 0 : index
    %53 = vector.load %arg6[%c3, %c0_35, %c0_36] : memref<5x112x160xbf16, #tpu.memory_space<vmem>>, vector<1x112x160xbf16>
    %54 = vector.shape_cast %53 : vector<1x112x160xbf16> to vector<112x160xbf16>
    %cst_37 = arith.constant dense<0.000000e+00> : vector<10x160xf32>
    %55 = tpu.matmul %52, %54, %cst_37 {dimension_numbers = #tpu.dot_dimension_numbers<[1], [0], [0], [1], [0, 0, 1, 1], [], []>} : vector<10x112xbf16>, vector<112x160xbf16>, vector<10x160xf32> -> vector<10x160xf32>
    %56 = arith.addf %50, %55 : vector<10x160xf32>
    %57 = vector.extract_strided_slice %33 {offsets = [4, 0], sizes = [10, 112], strides = [1, 1]} : vector<14x112xf32> to vector<10x112xf32>
    %58 = arith.truncf %57 : vector<10x112xf32> to vector<10x112xbf16>
    %c4 = arith.constant 4 : index
    %c0_38 = arith.constant 0 : index
    %c0_39 = arith.constant 0 : index
    %59 = vector.load %arg6[%c4, %c0_38, %c0_39] : memref<5x112x160xbf16, #tpu.memory_space<vmem>>, vector<1x112x160xbf16>
    %60 = vector.shape_cast %59 : vector<1x112x160xbf16> to vector<112x160xbf16>
    %cst_40 = arith.constant dense<0.000000e+00> : vector<10x160xf32>
    %61 = tpu.matmul %58, %60, %cst_40 {dimension_numbers = #tpu.dot_dimension_numbers<[1], [0], [0], [1], [0, 0, 1, 1], [], []>} : vector<10x112xbf16>, vector<112x160xbf16>, vector<10x160xf32> -> vector<10x160xf32>
    %62 = arith.addf %56, %61 : vector<10x160xf32>
    %c0_41 = arith.constant 0 : index
    %c0_42 = arith.constant 0 : index
    %63 = vector.load %arg7[%c0_41, %c0_42] : memref<1x160xf32, #tpu.memory_space<vmem>>, vector<1x160xf32>
    %64 = vector.broadcast %63 : vector<1x160xf32> to vector<10x160xf32>
    %65 = arith.addf %62, %64 : vector<10x160xf32>
    %cst_43 = arith.constant 0.000000e+00 : f32
    %66 = vector.broadcast %cst_43 : f32 to vector<10x160xf32>
    %67 = arith.maximumf %65, %66 : vector<10x160xf32>
    %68 = vector.extract_strided_slice %67 {offsets = [0, 0], sizes = [9, 160], strides = [1, 1]} : vector<10x160xf32> to vector<9x160xf32>
    %69 = vector.extract_strided_slice %67 {offsets = [1, 0], sizes = [9, 160], strides = [1, 1]} : vector<10x160xf32> to vector<9x160xf32>
    %70 = arith.maximumf %68, %69 : vector<9x160xf32>
    %71 = arith.truncf %70 : vector<9x160xf32> to vector<9x160xbf16>
    %c0_44 = arith.constant 0 : index
    %c0_45 = arith.constant 0 : index
    %72 = vector.load %arg8[%c0_44, %c0_45] : memref<5x9xbf16, #tpu.memory_space<vmem>>, vector<5x9xbf16>
    %cst_46 = arith.constant dense<0.000000e+00> : vector<5x160xf32>
    %73 = tpu.matmul %72, %71, %cst_46 {dimension_numbers = #tpu.dot_dimension_numbers<[1], [0], [0], [1], [0, 0, 1, 1], [], []>} : vector<5x9xbf16>, vector<9x160xbf16>, vector<5x160xf32> -> vector<5x160xf32>
    %74 = vector.extract_strided_slice %73 {offsets = [0, 0], sizes = [5, 159], strides = [1, 1]} : vector<5x160xf32> to vector<5x159xf32>
    %75 = vector.extract_strided_slice %73 {offsets = [0, 1], sizes = [5, 159], strides = [1, 1]} : vector<5x160xf32> to vector<5x159xf32>
    %76 = arith.maximumf %74, %75 : vector<5x159xf32>
    %77 = arith.truncf %76 : vector<5x159xf32> to vector<5x159xbf16>
    %c0_47 = arith.constant 0 : index
    %c0_48 = arith.constant 0 : index
    %78 = vector.load %arg9[%c0_47, %c0_48] : memref<159x80xbf16, #tpu.memory_space<vmem>>, vector<159x80xbf16>
    %cst_49 = arith.constant dense<0.000000e+00> : vector<5x80xf32>
    %79 = tpu.matmul %77, %78, %cst_49 {dimension_numbers = #tpu.dot_dimension_numbers<[1], [0], [0], [1], [0, 0, 1, 1], [], []>} : vector<5x159xbf16>, vector<159x80xbf16>, vector<5x80xf32> -> vector<5x80xf32>
    %80 = arith.truncf %79 : vector<5x80xf32> to vector<5x80xbf16>
    %c0_50 = arith.constant 0 : index
    %c0_51 = arith.constant 0 : index
    %81 = vector.load %arg10[%c0_50, %c0_51] : memref<80x640xbf16, #tpu.memory_space<vmem>>, vector<80x640xbf16>
    %cst_52 = arith.constant dense<0.000000e+00> : vector<5x640xf32>
    %82 = tpu.matmul %80, %81, %cst_52 {dimension_numbers = #tpu.dot_dimension_numbers<[1], [0], [0], [1], [0, 0, 1, 1], [], []>} : vector<5x80xbf16>, vector<80x640xbf16>, vector<5x640xf32> -> vector<5x640xf32>
    %c0_53 = arith.constant 0 : index
    %c0_54 = arith.constant 0 : index
    %83 = vector.load %arg11[%c0_53, %c0_54] : memref<1x128xf32, #tpu.memory_space<vmem>>, vector<1x128xf32>
    %84 = vector.extract_strided_slice %82 {offsets = [0, 0], sizes = [1, 128], strides = [1, 1]} : vector<5x640xf32> to vector<1x128xf32>
    %85 = arith.addf %83, %84 : vector<1x128xf32>
    %86 = vector.extract_strided_slice %82 {offsets = [1, 128], sizes = [1, 128], strides = [1, 1]} : vector<5x640xf32> to vector<1x128xf32>
    %87 = arith.addf %85, %86 : vector<1x128xf32>
    %88 = vector.extract_strided_slice %82 {offsets = [2, 256], sizes = [1, 128], strides = [1, 1]} : vector<5x640xf32> to vector<1x128xf32>
    %89 = arith.addf %87, %88 : vector<1x128xf32>
    %90 = vector.extract_strided_slice %82 {offsets = [3, 384], sizes = [1, 128], strides = [1, 1]} : vector<5x640xf32> to vector<1x128xf32>
    %91 = arith.addf %89, %90 : vector<1x128xf32>
    %92 = vector.extract_strided_slice %82 {offsets = [4, 512], sizes = [1, 128], strides = [1, 1]} : vector<5x640xf32> to vector<1x128xf32>
    %93 = arith.addf %91, %92 : vector<1x128xf32>
    %cst_55 = arith.constant 0.000000e+00 : f32
    %94 = vector.broadcast %cst_55 : f32 to vector<1x128xf32>
    %95 = arith.maximumf %93, %94 : vector<1x128xf32>
    %96 = arith.truncf %95 : vector<1x128xf32> to vector<1x128xbf16>
    %c0_56 = arith.constant 0 : index
    %c0_57 = arith.constant 0 : index
    %97 = vector.load %arg12[%c0_56, %c0_57] : memref<128x64xbf16, #tpu.memory_space<vmem>>, vector<128x64xbf16>
    %cst_58 = arith.constant dense<0.000000e+00> : vector<1x64xf32>
    %98 = tpu.matmul %96, %97, %cst_58 {dimension_numbers = #tpu.dot_dimension_numbers<[1], [0], [0], [1], [0, 0, 1, 1], [], []>} : vector<1x128xbf16>, vector<128x64xbf16>, vector<1x64xf32> -> vector<1x64xf32>
    %c0_59 = arith.constant 0 : index
    %c0_60 = arith.constant 0 : index
    %99 = vector.load %arg13[%c0_59, %c0_60] : memref<1x64xf32, #tpu.memory_space<vmem>>, vector<1x64xf32>
    %100 = arith.addf %98, %99 : vector<1x64xf32>
    %cst_61 = arith.constant 0.000000e+00 : f32
    %101 = vector.broadcast %cst_61 : f32 to vector<1x64xf32>
    %102 = arith.maximumf %100, %101 : vector<1x64xf32>
    %103 = arith.truncf %102 : vector<1x64xf32> to vector<1x64xbf16>
    %c0_62 = arith.constant 0 : index
    %c0_63 = arith.constant 0 : index
    %104 = vector.load %arg14[%c0_62, %c0_63] : memref<64x10xbf16, #tpu.memory_space<vmem>>, vector<64x10xbf16>
    %cst_64 = arith.constant dense<0.000000e+00> : vector<1x10xf32>
    %105 = tpu.matmul %103, %104, %cst_64 {dimension_numbers = #tpu.dot_dimension_numbers<[1], [0], [0], [1], [0, 0, 1, 1], [], []>} : vector<1x64xbf16>, vector<64x10xbf16>, vector<1x10xf32> -> vector<1x10xf32>
    %c0_65 = arith.constant 0 : index
    %c0_66 = arith.constant 0 : index
    %106 = vector.load %arg15[%c0_65, %c0_66] : memref<1x10xf32, #tpu.memory_space<vmem>>, vector<1x10xf32>
    %107 = arith.addf %105, %106 : vector<1x10xf32>
    %cst_67 = arith.constant dense<0xFF800000> : vector<1xf32>
    %108 = vector.multi_reduction <maximumf>, %107, %cst_67 [1] : vector<1x10xf32> to vector<1xf32>
    %109 = vector.shape_cast %108 : vector<1xf32> to vector<1x1xf32>
    %110 = vector.broadcast %109 : vector<1x1xf32> to vector<1x10xf32>
    %111 = arith.subf %107, %110 : vector<1x10xf32>
    %112 = math.exp %111 : vector<1x10xf32>
    %cst_68 = arith.constant dense<0.000000e+00> : vector<1xf32>
    %113 = vector.multi_reduction <add>, %112, %cst_68 [1] : vector<1x10xf32> to vector<1xf32>
    %114 = vector.shape_cast %113 : vector<1xf32> to vector<1x1xf32>
    %115 = math.log %114 : vector<1x1xf32>
    %116 = vector.broadcast %115 : vector<1x1xf32> to vector<1x10xf32>
    %117 = arith.subf %111, %116 : vector<1x10xf32>
    %c0_69 = arith.constant 0 : index
    %c0_70 = arith.constant 0 : index
    %c0_71 = arith.constant 0 : index
    %118 = vector.load %arg16[%c0_69, %c0_70, %c0_71] : memref<1x1x10xf32, #tpu.memory_space<vmem>>, vector<1x1x10xf32>
    %119 = vector.shape_cast %118 : vector<1x1x10xf32> to vector<1x10xf32>
    %120 = vector.shape_cast %117 : vector<1x10xf32> to vector<1x1x10xf32>
    tpu.vector_store %arg16[%c0_69, %c0_70, %c0_71], %120 {strides = array<i32>} : memref<1x1x10xf32, #tpu.memory_space<vmem>>, vector<1x1x10xf32>,
    return
  }
  func.func @transform_0(%arg0: i32) -> (i32, i32, i32, i32) {
    %c0_i32 = arith.constant 0 : i32
    %c0_i32_0 = arith.constant 0 : i32
    %c0_i32_1 = arith.constant 0 : i32
    %c0_i32_2 = arith.constant 0 : i32
    return %arg0, %c0_i32, %c0_i32_0, %c0_i32_1 : i32, i32, i32, i32
  }
  func.func @transform_1(%arg0: i32) -> (i32, i32) {
    %c0_i32 = arith.constant 0 : i32
    %c0_i32_0 = arith.constant 0 : i32
    %c0_i32_1 = arith.constant 0 : i32
    return %c0_i32, %c0_i32_0 : i32, i32
  }
  func.func @transform_2(%arg0: i32) -> (i32, i32) {
    %c0_i32 = arith.constant 0 : i32
    %c0_i32_0 = arith.constant 0 : i32
    %c0_i32_1 = arith.constant 0 : i32
    return %c0_i32, %c0_i32_0 : i32, i32
  }
  func.func @transform_3(%arg0: i32) -> (i32, i32) {
    %c0_i32 = arith.constant 0 : i32
    %c0_i32_0 = arith.constant 0 : i32
    %c0_i32_1 = arith.constant 0 : i32
    return %c0_i32, %c0_i32_0 : i32, i32
  }
  func.func @transform_4(%arg0: i32) -> (i32, i32) {
    %c0_i32 = arith.constant 0 : i32
    %c0_i32_0 = arith.constant 0 : i32
    %c0_i32_1 = arith.constant 0 : i32
    return %c0_i32, %c0_i32_0 : i32, i32
  }
  func.func @transform_5(%arg0: i32) -> (i32, i32, i32) {
    %c0_i32 = arith.constant 0 : i32
    %c0_i32_0 = arith.constant 0 : i32
    %c0_i32_1 = arith.constant 0 : i32
    %c0_i32_2 = arith.constant 0 : i32
    return %c0_i32, %c0_i32_0, %c0_i32_1 : i32, i32, i32
  }
  func.func @transform_6(%arg0: i32) -> (i32, i32) {
    %c0_i32 = arith.constant 0 : i32
    %c0_i32_0 = arith.constant 0 : i32
    %c0_i32_1 = arith.constant 0 : i32
    return %c0_i32, %c0_i32_0 : i32, i32
  }
  func.func @transform_7(%arg0: i32) -> (i32, i32) {
    %c0_i32 = arith.constant 0 : i32
    %c0_i32_0 = arith.constant 0 : i32
    %c0_i32_1 = arith.constant 0 : i32
    return %c0_i32, %c0_i32_0 : i32, i32
  }
  func.func @transform_8(%arg0: i32) -> (i32, i32) {
    %c0_i32 = arith.constant 0 : i32
    %c0_i32_0 = arith.constant 0 : i32
    %c0_i32_1 = arith.constant 0 : i32
    return %c0_i32, %c0_i32_0 : i32, i32
  }
  func.func @transform_9(%arg0: i32) -> (i32, i32) {
    %c0_i32 = arith.constant 0 : i32
    %c0_i32_0 = arith.constant 0 : i32
    %c0_i32_1 = arith.constant 0 : i32
    return %c0_i32, %c0_i32_0 : i32, i32
  }
  func.func @transform_10(%arg0: i32) -> (i32, i32) {
    %c0_i32 = arith.constant 0 : i32
    %c0_i32_0 = arith.constant 0 : i32
    %c0_i32_1 = arith.constant 0 : i32
    return %c0_i32, %c0_i32_0 : i32, i32
  }
  func.func @transform_11(%arg0: i32) -> (i32, i32) {
    %c0_i32 = arith.constant 0 : i32
    %c0_i32_0 = arith.constant 0 : i32
    %c0_i32_1 = arith.constant 0 : i32
    return %c0_i32, %c0_i32_0 : i32, i32
  }
  func.func @transform_12(%arg0: i32) -> (i32, i32) {
    %c0_i32 = arith.constant 0 : i32
    %c0_i32_0 = arith.constant 0 : i32
    %c0_i32_1 = arith.constant 0 : i32
    return %c0_i32, %c0_i32_0 : i32, i32
  }
  func.func @transform_13(%arg0: i32) -> (i32, i32) {
    %c0_i32 = arith.constant 0 : i32
    %c0_i32_0 = arith.constant 0 : i32
    %c0_i32_1 = arith.constant 0 : i32
    return %c0_i32, %c0_i32_0 : i32, i32
  }
  func.func @transform_14(%arg0: i32) -> (i32, i32) {
    %c0_i32 = arith.constant 0 : i32
    %c0_i32_0 = arith.constant 0 : i32
    %c0_i32_1 = arith.constant 0 : i32
    return %c0_i32, %c0_i32_0 : i32, i32
  }
  func.func @transform_15(%arg0: i32) -> (i32, i32, i32) {
    %c0_i32 = arith.constant 0 : i32
    %c0_i32_0 = arith.constant 0 : i32
    %c0_i32_1 = arith.constant 0 : i32
    return %arg0, %c0_i32, %c0_i32_0 : i32, i32, i32
  }
}

</mosaic_0001>

<llo_original>
// kernel: lenet5_forward.1
$region0: #{lenet5_forward.1}
  #allocation0 [shape = 'u32[]', space=smem, size = 0x4, offset = 0x4, fixed_abs, tag = 'smem constant byte address 0x4 - core index']
  #allocation1 [shape = 'u32[144,128]{1,0:T(1,128)}', space=vmem, size = 0x12000, scoped, tag = 'internal scratch']
  #allocation2 [shape = 'f32[28,160]{1,0:T(8,128)}', space=vmem, size = 0x8000, scoped, tag = 'scratch operand']
  %s0 = inlined_call_operand.vmem [shape: f32[2,1,28,28], index: 0, kind: input, shape index: {}]
  %s1 = inlined_call_operand.vmem [shape: bf16[160,224], index: 1, kind: input, shape index: {}]
  %s2 = inlined_call_operand.vmem [shape: f32[1,224], index: 2, kind: input, shape index: {}]
  %s3 = inlined_call_operand.vmem [shape: bf16[14,27], index: 3, kind: input, shape index: {}]
  %s4 = inlined_call_operand.vmem [shape: bf16[223,112], index: 4, kind: input, shape index: {}]
  %s5 = inlined_call_operand.vmem [shape: bf16[5,112,160], index: 5, kind: input, shape index: {}]
  %s6 = inlined_call_operand.vmem [shape: f32[1,160], index: 6, kind: input, shape index: {}]
  %s7 = inlined_call_operand.vmem [shape: bf16[5,9], index: 7, kind: input, shape index: {}]
  %s8 = inlined_call_operand.vmem [shape: bf16[159,80], index: 8, kind: input, shape index: {}]
  %s9 = inlined_call_operand.vmem [shape: bf16[80,640], index: 9, kind: input, shape index: {}]
  %s10 = inlined_call_operand.vmem [shape: f32[1,128], index: 10, kind: input, shape index: {}]
  %s11 = inlined_call_operand.vmem [shape: bf16[128,64], index: 11, kind: input, shape index: {}]
  %s12 = inlined_call_operand.vmem [shape: f32[1,64], index: 12, kind: input, shape index: {}]
  %s13 = inlined_call_operand.vmem [shape: bf16[64,10], index: 13, kind: input, shape index: {}]
  %s14 = inlined_call_operand.vmem [shape: f32[1,10], index: 14, kind: input, shape index: {}]
  %s15 = inlined_call_operand.hbm [shape: f32[2,1,10], index: 15, kind: output, shape index: {}]
  %s16 = sld [smem:[#allocation0]]
  $region93: #{lenet5_forward.1} parent=0
    _
  %s18 = ssub.s32 1, %s16
  %s19 = scalar_select 0, %s18, %s16
  $region1: #{lenet5_forward.1} parent=0
    #allocation3 [shape = 'u8[1024]{0}', space=vmem, size = 0x400, scoped, tag = 'output window, operand 0']
    #allocation4 [shape = 's32[2]{0}', space=sflag, size = 0x8, scoped, tag = 'scoped memory for lenet5_forward.1']
    %20 = vsyncpa [#allocation4], 0
    %s21 = scalar_lea.sflag [#allocation4], 1
    %22 = vsyncpa %s21, 0
    loop: start=0, step=1, limit=4
    $region2: #{lenet5_forward.1} parent=1 // loop_pre_header
      _
    $region3: #{lenet5_forward.1} parent=1 // loop_header
      %s24 = sphi 0, %s28
      %p25 = scmp.ge.s32.totalorder %s24, 4
      %s34 = sphi 0, %s36
      %s37 = sphi 0, %s34
      %s38 = sphi 0, %s37
      %s54 = sphi 0, %s38
      %s58 = sphi 0, %s58
      %s60 = sphi 0, %s58
      %s61 = sphi 0, %s60
      %s75 = sphi 0, %s61
      %s79 = sphi 0, %s79
      %s81 = sphi 0, %s79
      %s82 = sphi 0, %s81
      %s96 = sphi 0, %s82
      %s100 = sphi 0, %s100
      %s102 = sphi 0, %s100
      %s103 = sphi 0, %s102
      %s117 = sphi 0, %s103
      %s121 = sphi 0, %s121
      %s123 = sphi 0, %s121
      %s124 = sphi 0, %s123
      %s138 = sphi 0, %s124
      %s142 = sphi 0, %s142
      %s144 = sphi 0, %s142
      %s145 = sphi 0, %s144
      %s159 = sphi 0, %s145
      %s163 = sphi 0, %s163
      %s165 = sphi 0, %s163
      %s166 = sphi 0, %s165
      %s180 = sphi 0, %s166
      %s184 = sphi 0, %s184
      %s186 = sphi 0, %s184
      %s187 = sphi 0, %s186
      %s201 = sphi 0, %s187
      %s205 = sphi 0, %s205
      %s207 = sphi 0, %s205
      %s208 = sphi 0, %s207
      %s222 = sphi 0, %s208
      %s226 = sphi 0, %s226
      %s228 = sphi 0, %s226
      %s229 = sphi 0, %s228
      %s243 = sphi 0, %s229
      %s247 = sphi 0, %s247
      %s249 = sphi 0, %s247
      %s250 = sphi 0, %s249
      %s264 = sphi 0, %s250
      %s268 = sphi 0, %s268
      %s270 = sphi 0, %s268
      %s271 = sphi 0, %s270
      %s285 = sphi 0, %s271
      %s289 = sphi 0, %s289
      %s291 = sphi 0, %s289
      %s292 = sphi 0, %s291
      %s306 = sphi 0, %s292
      %s310 = sphi 0, %s310
      %s312 = sphi 0, %s310
      %s313 = sphi 0, %s312
      %s327 = sphi 0, %s313
      %s331 = sphi 0, %s331
      %s333 = sphi 0, %s331
      %s334 = sphi 0, %s333
      %s348 = sphi 0, %s334
      %s354 = sphi 0, %s356
      %s357 = sphi 0, %s354
      %s358 = sphi 0, %s357
      %s374 = sphi 0, %s358
    $region4: #{lenet5_forward.1} parent=1 // loop_header_branch
      %27 = sbr.rel (%p25) target = $region8
    $region5: #{lenet5_forward.1} parent=1 // loop_body
      %s29 = ssub.s32 %s24, 1
      %s30 = ssub.s32 %s24, 2
      %s31 = sadd.s32 %s24, 1
      %s32 = ssub.s32 %s24, %s31
      %p33 = scmp.eq.s32.totalorder %s32, 0
      %s35 = sadd.s32 %s34, 1
      %s36 = scalar_select %p33, %s34, %s35
      %p39 = pneg %p33
      %p40 = scmp.eq.s32.totalorder %s24, 1
      %p41 = por %p39, %p40
      %p42 = scmp.ne.s32.totalorder %s34, %s37
      %p43 = scmp.eq.s32.totalorder %s24, 0
      %p44 = por %p42, %p43
      %p45 = scmp.ne.s32.totalorder %s34, %s37
      %p46 = scmp.eq.s32.totalorder %s29, 1
      %p47 = por %p45, %p46
      %p48 = scmp.ne.s32.totalorder %s37, %s38
      %p49 = scmp.eq.s32.totalorder %s29, 0
      %p50 = por %p48, %p49
      %p51 = scmp.ne.s32.totalorder %s37, %s38
      %p52 = scmp.eq.s32.totalorder %s30, 1
      %p53 = por %p51, %p52
      %p55 = scmp.ne.s32.totalorder %s38, %s54
      %p56 = scmp.eq.s32.totalorder %s30, 0
      %p57 = por %p55, %p56
      %s59 = sadd.s32 %s58, 1
      %p62 = scmp.eq.s32.totalorder %s24, 1
      %p63 = scmp.ne.s32.totalorder %s58, %s60
      %p64 = scmp.eq.s32.totalorder %s24, 0
      %p65 = por %p63, %p64
      %p66 = scmp.ne.s32.totalorder %s58, %s60
      %p67 = scmp.eq.s32.totalorder %s29, 1
      %p68 = por %p66, %p67
      %p69 = scmp.ne.s32.totalorder %s60, %s61
      %p70 = scmp.eq.s32.totalorder %s29, 0
      %p71 = por %p69, %p70
      %p72 = scmp.ne.s32.totalorder %s60, %s61
      %p73 = scmp.eq.s32.totalorder %s30, 1
      %p74 = por %p72, %p73
      %p76 = scmp.ne.s32.totalorder %s61, %s75
      %p77 = scmp.eq.s32.totalorder %s30, 0
      %p78 = por %p76, %p77
      %s80 = sadd.s32 %s79, 1
      %p83 = scmp.eq.s32.totalorder %s24, 1
      %p84 = scmp.ne.s32.totalorder %s79, %s81
      %p85 = scmp.eq.s32.totalorder %s24, 0
      %p86 = por %p84, %p85
      %p87 = scmp.ne.s32.totalorder %s79, %s81
      %p88 = scmp.eq.s32.totalorder %s29, 1
      %p89 = por %p87, %p88
      %p90 = scmp.ne.s32.totalorder %s81, %s82
      %p91 = scmp.eq.s32.totalorder %s29, 0
      %p92 = por %p90, %p91
      %p93 = scmp.ne.s32.totalorder %s81, %s82
      %p94 = scmp.eq.s32.totalorder %s30, 1
      %p95 = por %p93, %p94
      %p97 = scmp.ne.s32.totalorder %s82, %s96
      %p98 = scmp.eq.s32.totalorder %s30, 0
      %p99 = por %p97, %p98
      %s101 = sadd.s32 %s100, 1
      %p104 = scmp.eq.s32.totalorder %s24, 1
      %p105 = scmp.ne.s32.totalorder %s100, %s102
      %p106 = scmp.eq.s32.totalorder %s24, 0
      %p107 = por %p105, %p106
      %p108 = scmp.ne.s32.totalorder %s100, %s102
      %p109 = scmp.eq.s32.totalorder %s29, 1
      %p110 = por %p108, %p109
      %p111 = scmp.ne.s32.totalorder %s102, %s103
      %p112 = scmp.eq.s32.totalorder %s29, 0
      %p113 = por %p111, %p112
      %p114 = scmp.ne.s32.totalorder %s102, %s103
      %p115 = scmp.eq.s32.totalorder %s30, 1
      %p116 = por %p114, %p115
      %p118 = scmp.ne.s32.totalorder %s103, %s117
      %p119 = scmp.eq.s32.totalorder %s30, 0
      %p120 = por %p118, %p119
      %s122 = sadd.s32 %s121, 1
      %p125 = scmp.eq.s32.totalorder %s24, 1
      %p126 = scmp.ne.s32.totalorder %s121, %s123
      %p127 = scmp.eq.s32.totalorder %s24, 0
      %p128 = por %p126, %p127
      %p129 = scmp.ne.s32.totalorder %s121, %s123
      %p130 = scmp.eq.s32.totalorder %s29, 1
      %p131 = por %p129, %p130
      %p132 = scmp.ne.s32.totalorder %s123, %s124
      %p133 = scmp.eq.s32.totalorder %s29, 0
      %p134 = por %p132, %p133
      %p135 = scmp.ne.s32.totalorder %s123, %s124
      %p136 = scmp.eq.s32.totalorder %s30, 1
      %p137 = por %p135, %p136
      %p139 = scmp.ne.s32.totalorder %s124, %s138
      %p140 = scmp.eq.s32.totalorder %s30, 0
      %p141 = por %p139, %p140
      %s143 = sadd.s32 %s142, 1
      %p146 = scmp.eq.s32.totalorder %s24, 1
      %p147 = scmp.ne.s32.totalorder %s142, %s144
      %p148 = scmp.eq.s32.totalorder %s24, 0
      %p149 = por %p147, %p148
      %p150 = scmp.ne.s32.totalorder %s142, %s144
      %p151 = scmp.eq.s32.totalorder %s29, 1
      %p152 = por %p150, %p151
      %p153 = scmp.ne.s32.totalorder %s144, %s145
      %p154 = scmp.eq.s32.totalorder %s29, 0
      %p155 = por %p153, %p154
      %p156 = scmp.ne.s32.totalorder %s144, %s145
      %p157 = scmp.eq.s32.totalorder %s30, 1
      %p158 = por %p156, %p157
      %p160 = scmp.ne.s32.totalorder %s145, %s159
      %p161 = scmp.eq.s32.totalorder %s30, 0
      %p162 = por %p160, %p161
      %s164 = sadd.s32 %s163, 1
      %p167 = scmp.eq.s32.totalorder %s24, 1
      %p168 = scmp.ne.s32.totalorder %s163, %s165
      %p169 = scmp.eq.s32.totalorder %s24, 0
      %p170 = por %p168, %p169
      %p171 = scmp.ne.s32.totalorder %s163, %s165
      %p172 = scmp.eq.s32.totalorder %s29, 1
      %p173 = por %p171, %p172
      %p174 = scmp.ne.s32.totalorder %s165, %s166
      %p175 = scmp.eq.s32.totalorder %s29, 0
      %p176 = por %p174, %p175
      %p177 = scmp.ne.s32.totalorder %s165, %s166
      %p178 = scmp.eq.s32.totalorder %s30, 1
      %p179 = por %p177, %p178
      %p181 = scmp.ne.s32.totalorder %s166, %s180
      %p182 = scmp.eq.s32.totalorder %s30, 0
      %p183 = por %p181, %p182
      %s185 = sadd.s32 %s184, 1
      %p188 = scmp.eq.s32.totalorder %s24, 1
      %p189 = scmp.ne.s32.totalorder %s184, %s186
      %p190 = scmp.eq.s32.totalorder %s24, 0
      %p191 = por %p189, %p190
      %p192 = scmp.ne.s32.totalorder %s184, %s186
      %p193 = scmp.eq.s32.totalorder %s29, 1
      %p194 = por %p192, %p193
      %p195 = scmp.ne.s32.totalorder %s186, %s187
      %p196 = scmp.eq.s32.totalorder %s29, 0
      %p197 = por %p195, %p196
      %p198 = scmp.ne.s32.totalorder %s186, %s187
      %p199 = scmp.eq.s32.totalorder %s30, 1
      %p200 = por %p198, %p199
      %p202 = scmp.ne.s32.totalorder %s187, %s201
      %p203 = scmp.eq.s32.totalorder %s30, 0
      %p204 = por %p202, %p203
      %s206 = sadd.s32 %s205, 1
      %p209 = scmp.eq.s32.totalorder %s24, 1
      %p210 = scmp.ne.s32.totalorder %s205, %s207
      %p211 = scmp.eq.s32.totalorder %s24, 0
      %p212 = por %p210, %p211
      %p213 = scmp.ne.s32.totalorder %s205, %s207
      %p214 = scmp.eq.s32.totalorder %s29, 1
      %p215 = por %p213, %p214
      %p216 = scmp.ne.s32.totalorder %s207, %s208
      %p217 = scmp.eq.s32.totalorder %s29, 0
      %p218 = por %p216, %p217
      %p219 = scmp.ne.s32.totalorder %s207, %s208
      %p220 = scmp.eq.s32.totalorder %s30, 1
      %p221 = por %p219, %p220
      %p223 = scmp.ne.s32.totalorder %s208, %s222
      %p224 = scmp.eq.s32.totalorder %s30, 0
      %p225 = por %p223, %p224
      %s227 = sadd.s32 %s226, 1
      %p230 = scmp.eq.s32.totalorder %s24, 1
      %p231 = scmp.ne.s32.totalorder %s226, %s228
      %p232 = scmp.eq.s32.totalorder %s24, 0
      %p233 = por %p231, %p232
      %p234 = scmp.ne.s32.totalorder %s226, %s228
      %p235 = scmp.eq.s32.totalorder %s29, 1
      %p236 = por %p234, %p235
      %p237 = scmp.ne.s32.totalorder %s228, %s229
      %p238 = scmp.eq.s32.totalorder %s29, 0
      %p239 = por %p237, %p238
      %p240 = scmp.ne.s32.totalorder %s228, %s229
      %p241 = scmp.eq.s32.totalorder %s30, 1
      %p242 = por %p240, %p241
      %p244 = scmp.ne.s32.totalorder %s229, %s243
      %p245 = scmp.eq.s32.totalorder %s30, 0
      %p246 = por %p244, %p245
      %s248 = sadd.s32 %s247, 1
      %p251 = scmp.eq.s32.totalorder %s24, 1
      %p252 = scmp.ne.s32.totalorder %s247, %s249
      %p253 = scmp.eq.s32.totalorder %s24, 0
      %p254 = por %p252, %p253
      %p255 = scmp.ne.s32.totalorder %s247, %s249
      %p256 = scmp.eq.s32.totalorder %s29, 1
      %p257 = por %p255, %p256
      %p258 = scmp.ne.s32.totalorder %s249, %s250
      %p259 = scmp.eq.s32.totalorder %s29, 0
      %p260 = por %p258, %p259
      %p261 = scmp.ne.s32.totalorder %s249, %s250
      %p262 = scmp.eq.s32.totalorder %s30, 1
      %p263 = por %p261, %p262
      %p265 = scmp.ne.s32.totalorder %s250, %s264
      %p266 = scmp.eq.s32.totalorder %s30, 0
      %p267 = por %p265, %p266
      %s269 = sadd.s32 %s268, 1
      %p272 = scmp.eq.s32.totalorder %s24, 1
      %p273 = scmp.ne.s32.totalorder %s268, %s270
      %p274 = scmp.eq.s32.totalorder %s24, 0
      %p275 = por %p273, %p274
      %p276 = scmp.ne.s32.totalorder %s268, %s270
      %p277 = scmp.eq.s32.totalorder %s29, 1
      %p278 = por %p276, %p277
      %p279 = scmp.ne.s32.totalorder %s270, %s271
      %p280 = scmp.eq.s32.totalorder %s29, 0
      %p281 = por %p279, %p280
      %p282 = scmp.ne.s32.totalorder %s270, %s271
      %p283 = scmp.eq.s32.totalorder %s30, 1
      %p284 = por %p282, %p283
      %p286 = scmp.ne.s32.totalorder %s271, %s285
      %p287 = scmp.eq.s32.totalorder %s30, 0
      %p288 = por %p286, %p287
      %s290 = sadd.s32 %s289, 1
      %p293 = scmp.eq.s32.totalorder %s24, 1
      %p294 = scmp.ne.s32.totalorder %s289, %s291
      %p295 = scmp.eq.s32.totalorder %s24, 0
      %p296 = por %p294, %p295
      %p297 = scmp.ne.s32.totalorder %s289, %s291
      %p298 = scmp.eq.s32.totalorder %s29, 1
      %p299 = por %p297, %p298
      %p300 = scmp.ne.s32.totalorder %s291, %s292
      %p301 = scmp.eq.s32.totalorder %s29, 0
      %p302 = por %p300, %p301
      %p303 = scmp.ne.s32.totalorder %s291, %s292
      %p304 = scmp.eq.s32.totalorder %s30, 1
      %p305 = por %p303, %p304
      %p307 = scmp.ne.s32.totalorder %s292, %s306
      %p308 = scmp.eq.s32.totalorder %s30, 0
      %p309 = por %p307, %p308
      %s311 = sadd.s32 %s310, 1
      %p314 = scmp.eq.s32.totalorder %s24, 1
      %p315 = scmp.ne.s32.totalorder %s310, %s312
      %p316 = scmp.eq.s32.totalorder %s24, 0
      %p317 = por %p315, %p316
      %p318 = scmp.ne.s32.totalorder %s310, %s312
      %p319 = scmp.eq.s32.totalorder %s29, 1
      %p320 = por %p318, %p319
      %p321 = scmp.ne.s32.totalorder %s312, %s313
      %p322 = scmp.eq.s32.totalorder %s29, 0
      %p323 = por %p321, %p322
      %p324 = scmp.ne.s32.totalorder %s312, %s313
      %p325 = scmp.eq.s32.totalorder %s30, 1
      %p326 = por %p324, %p325
      %p328 = scmp.ne.s32.totalorder %s313, %s327
      %p329 = scmp.eq.s32.totalorder %s30, 0
      %p330 = por %p328, %p329
      %s332 = sadd.s32 %s331, 1
      %p335 = scmp.eq.s32.totalorder %s24, 1
      %p336 = scmp.ne.s32.totalorder %s331, %s333
      %p337 = scmp.eq.s32.totalorder %s24, 0
      %p338 = por %p336, %p337
      %p339 = scmp.ne.s32.totalorder %s331, %s333
      %p340 = scmp.eq.s32.totalorder %s29, 1
      %p341 = por %p339, %p340
      %p342 = scmp.ne.s32.totalorder %s333, %s334
      %p343 = scmp.eq.s32.totalorder %s29, 0
      %p344 = por %p342, %p343
      %p345 = scmp.ne.s32.totalorder %s333, %s334
      %p346 = scmp.eq.s32.totalorder %s30, 1
      %p347 = por %p345, %p346
      %p349 = scmp.ne.s32.totalorder %s334, %s348
      %p350 = scmp.eq.s32.totalorder %s30, 0
      %p351 = por %p349, %p350
      %s352 = ssub.s32 %s24, %s31
      %p353 = scmp.eq.s32.totalorder %s352, 0
      %s355 = sadd.s32 %s354, 1
      %s356 = scalar_select %p353, %s354, %s355
      %p359 = pneg %p353
      %p360 = scmp.eq.s32.totalorder %s24, 1
      %p361 = por %p359, %p360
      %p362 = scmp.ne.s32.totalorder %s354, %s357
      %p363 = scmp.eq.s32.totalorder %s24, 0
      %p364 = por %p362, %p363
      %p365 = scmp.ne.s32.totalorder %s354, %s357
      %p366 = scmp.eq.s32.totalorder %s29, 1
      %p367 = por %p365, %p366
      %p368 = scmp.ne.s32.totalorder %s357, %s358
      %p369 = scmp.eq.s32.totalorder %s29, 0
      %p370 = por %p368, %p369
      %p371 = scmp.ne.s32.totalorder %s357, %s358
      %p372 = scmp.eq.s32.totalorder %s30, 1
      %p373 = por %p371, %p372
      %p375 = scmp.ne.s32.totalorder %s358, %s374
      %p376 = scmp.eq.s32.totalorder %s30, 0
      %p377 = por %p375, %p376
      %p378 = scmp.le.s32.totalorder 1, %s24
      %p379 = scmp.lt.s32.totalorder %s24, 3
      %p380 = pnand %p378, %p379
      %p381 = pneg %p380
      // Predicated region
      $region9: #{lenet5_forward.1} parent=5 // pred_check
        _
      $region10: #{lenet5_forward.1} parent=5 // pred_check_branch
        %383 = sbr.rel (%p380) target = $region12
      $region11: #{lenet5_forward.1} parent=5 // pred_region
        %s384 = ssub.s32 %s24, 1
        // Predicated region
        $region13: #{lenet5_forward.1} parent=11 // pred_check
          %p385 = pneg %p71
        $region14: #{lenet5_forward.1} parent=11 // pred_check_branch
          %387 = sbr.rel (%p385) target = $region16
        $region15: #{lenet5_forward.1} parent=11 // pred_region
          _
        $region16: #{lenet5_forward.1} parent=11 // pred_fallthru
          _
        // Predicated region
        $region17: #{lenet5_forward.1} parent=11 // pred_check
          %p388 = pneg %p92
        $region18: #{lenet5_forward.1} parent=11 // pred_check_branch
          %390 = sbr.rel (%p388) target = $region20
        $region19: #{lenet5_forward.1} parent=11 // pred_region
          _
        $region20: #{lenet5_forward.1} parent=11 // pred_fallthru
          _
        // Predicated region
        $region21: #{lenet5_forward.1} parent=11 // pred_check
          %p391 = pneg %p113
        $region22: #{lenet5_forward.1} parent=11 // pred_check_branch
          %393 = sbr.rel (%p391) target = $region24
        $region23: #{lenet5_forward.1} parent=11 // pred_region
          _
        $region24: #{lenet5_forward.1} parent=11 // pred_fallthru
          _
        // Predicated region
        $region25: #{lenet5_forward.1} parent=11 // pred_check
          %p394 = pneg %p134
        $region26: #{lenet5_forward.1} parent=11 // pred_check_branch
          %396 = sbr.rel (%p394) target = $region28
        $region27: #{lenet5_forward.1} parent=11 // pred_region
          _
        $region28: #{lenet5_forward.1} parent=11 // pred_fallthru
          _
        // Predicated region
        $region29: #{lenet5_forward.1} parent=11 // pred_check
          %p397 = pneg %p155
        $region30: #{lenet5_forward.1} parent=11 // pred_check_branch
          %399 = sbr.rel (%p397) target = $region32
        $region31: #{lenet5_forward.1} parent=11 // pred_region
          _
        $region32: #{lenet5_forward.1} parent=11 // pred_fallthru
          _
        // Predicated region
        $region33: #{lenet5_forward.1} parent=11 // pred_check
          %p400 = pneg %p176
        $region34: #{lenet5_forward.1} parent=11 // pred_check_branch
          %402 = sbr.rel (%p400) target = $region36
        $region35: #{lenet5_forward.1} parent=11 // pred_region
          _
        $region36: #{lenet5_forward.1} parent=11 // pred_fallthru
          _
        // Predicated region
        $region37: #{lenet5_forward.1} parent=11 // pred_check
          %p403 = pneg %p197
        $region38: #{lenet5_forward.1} parent=11 // pred_check_branch
          %405 = sbr.rel (%p403) target = $region40
        $region39: #{lenet5_forward.1} parent=11 // pred_region
          _
        $region40: #{lenet5_forward.1} parent=11 // pred_fallthru
          _
        // Predicated region
        $region41: #{lenet5_forward.1} parent=11 // pred_check
          %p406 = pneg %p218
        $region42: #{lenet5_forward.1} parent=11 // pred_check_branch
          %408 = sbr.rel (%p406) target = $region44
        $region43: #{lenet5_forward.1} parent=11 // pred_region
          _
        $region44: #{lenet5_forward.1} parent=11 // pred_fallthru
          _
        // Predicated region
        $region45: #{lenet5_forward.1} parent=11 // pred_check
          %p409 = pneg %p239
        $region46: #{lenet5_forward.1} parent=11 // pred_check_branch
          %411 = sbr.rel (%p409) target = $region48
        $region47: #{lenet5_forward.1} parent=11 // pred_region
          _
        $region48: #{lenet5_forward.1} parent=11 // pred_fallthru
          _
        // Predicated region
        $region49: #{lenet5_forward.1} parent=11 // pred_check
          %p412 = pneg %p260
        $region50: #{lenet5_forward.1} parent=11 // pred_check_branch
          %414 = sbr.rel (%p412) target = $region52
        $region51: #{lenet5_forward.1} parent=11 // pred_region
          _
        $region52: #{lenet5_forward.1} parent=11 // pred_fallthru
          _
        // Predicated region
        $region53: #{lenet5_forward.1} parent=11 // pred_check
          %p415 = pneg %p281
        $region54: #{lenet5_forward.1} parent=11 // pred_check_branch
          %417 = sbr.rel (%p415) target = $region56
        $region55: #{lenet5_forward.1} parent=11 // pred_region
          _
        $region56: #{lenet5_forward.1} parent=11 // pred_fallthru
          _
        // Predicated region
        $region57: #{lenet5_forward.1} parent=11 // pred_check
          %p418 = pneg %p302
        $region58: #{lenet5_forward.1} parent=11 // pred_check_branch
          %420 = sbr.rel (%p418) target = $region60
        $region59: #{lenet5_forward.1} parent=11 // pred_region
          _
        $region60: #{lenet5_forward.1} parent=11 // pred_fallthru
          _
        // Predicated region
        $region61: #{lenet5_forward.1} parent=11 // pred_check
          %p421 = pneg %p323
        $region62: #{lenet5_forward.1} parent=11 // pred_check_branch
          %423 = sbr.rel (%p421) target = $region64
        $region63: #{lenet5_forward.1} parent=11 // pred_region
          _
        $region64: #{lenet5_forward.1} parent=11 // pred_fallthru
          _
        // Predicated region
        $region65: #{lenet5_forward.1} parent=11 // pred_check
          %p424 = pneg %p344
        $region66: #{lenet5_forward.1} parent=11 // pred_check_branch
          %426 = sbr.rel (%p424) target = $region68
        $region67: #{lenet5_forward.1} parent=11 // pred_region
          _
        $region68: #{lenet5_forward.1} parent=11 // pred_fallthru
          _
      $region12: #{lenet5_forward.1} parent=5 // pred_fallthru
        _
      %p427 = scmp.lt.s32.totalorder %s24, 2
      // Predicated region
      $region69: #{lenet5_forward.1} parent=5 // pred_check
        %p428 = pneg %p427
      $region70: #{lenet5_forward.1} parent=5 // pred_check_branch
        %430 = sbr.rel (%p428) target = $region72
      $region71: #{lenet5_forward.1} parent=5 // pred_region
        // Predicated region
        $region73: #{lenet5_forward.1} parent=71 // pred_check
          %p431 = pneg %p44
        $region74: #{lenet5_forward.1} parent=71 // pred_check_branch
          %433 = sbr.rel (%p431) target = $region76
        $region75: #{lenet5_forward.1} parent=71 // pred_region
          %p434 = scmp.lt.s32.totalorder %s24, 1
          %s435 = scalar_select %p434, %s24, 1
          %s436 = smul.addr %s435, 4
          %s437 = smul.addr %s436, 8
          %s438 = scalar_lea.vmem %s0, %s437
        $region76: #{lenet5_forward.1} parent=71 // pred_fallthru
          _
      $region72: #{lenet5_forward.1} parent=5 // pred_fallthru
        _
      %p439 = scmp.le.s32.totalorder 1, %s24
      %p440 = scmp.lt.s32.totalorder %s24, 3
      %p441 = pnand %p439, %p440
      %p442 = pneg %p441
      // Predicated region
      $region77: #{lenet5_forward.1} parent=5 // pred_check
        _
      $region78: #{lenet5_forward.1} parent=5 // pred_check_branch
        %444 = sbr.rel (%p441) target = $region80
      $region79: #{lenet5_forward.1} parent=5 // pred_region
        %s445 = ssub.s32 %s24, 1
        %p446 = scmp.lt.s32.totalorder %s29, 1
        %s447 = scalar_select %p446, %s29, 1
        %s448 = smul.addr %s447, 4
        %s449 = smul.addr %s448, 8
        %s450 = scalar_lea.vmem %s0, %s449
        %p451 = pneg %p50
        %p452 = pneg %p47
        %p453 = pneg %p71
        %p454 = pneg %p68
        %p455 = pneg %p92
        %p456 = pneg %p89
        %p457 = pneg %p113
        %p458 = pneg %p110
        %p459 = pneg %p134
        %p460 = pneg %p131
        %p461 = pneg %p155
        %p462 = pneg %p152
        %p463 = pneg %p176
        %p464 = pneg %p173
        %p465 = pneg %p197
        %p466 = pneg %p194
        %p467 = pneg %p218
        %p468 = pneg %p215
        %p469 = pneg %p239
        %p470 = pneg %p236
        %p471 = pneg %p260
        %p472 = pneg %p257
        %p473 = pneg %p281
        %p474 = pneg %p278
        %p475 = pneg %p302
        %p476 = pneg %p299
        %p477 = pneg %p323
        %p478 = pneg %p320
        %p479 = pneg %p344
        %p480 = pneg %p341
        %p481 = pneg %p370
        %p482 = pneg %p367
        %s483 = sand.u32 %s357, 1
        %s484 = scalar_lea.sflag [#allocation4], %s483
        %s485 = sand.u32 %s357, 1
        %s486 = scalar_lea.vmem [#allocation3], %s485
        %p487 = scmp.lt.s32.totalorder %s29, 1
        %s488 = scalar_select %p487, %s29, 1
        %s489 = smul.addr %s488, 4
        %s490 = smul.addr %s489, 8
        %s491 = scalar_lea.vmem %s0, %s490
        %v493 = vld [vmem:[%s491] sm:$0xff]
        %v494 = vld [vmem:[%s491 + $0x8] sm:$0xff]
        %v495 = vld [vmem:[%s491 + $0x10] sm:$0xff]
        %v496 = vld [vmem:[%s491 + $0x18] sm:$0xf]
        %497 = vst [vmem:[#allocation2] sm:$0xff] 0.0
        %vm498 = vcmask 261120
        %499 = vst.msk [vmem:[#allocation2 + $0x8] sm:$0xff] %vm498, 0.0
        %500 = vst [vmem:[#allocation2 + $0x10] sm:$0xff] 0.0
        %501 = vst.msk [vmem:[#allocation2 + $0x18] sm:$0xff] %vm498, 0.0
        %502 = vst [vmem:[#allocation2 + $0x20] sm:$0xff] 0.0
        %503 = vst.msk [vmem:[#allocation2 + $0x28] sm:$0xff] %vm498, 0.0
        %504 = vst [vmem:[#allocation2 + $0x30] sm:$0xf] 0.0
        %vm505 = vcmask 257024
        %506 = vst.msk [vmem:[#allocation2 + $0x38] sm:$0xf] %vm505, 0.0
        %vm511 = vcmask 1041408
        %v512 = vrot.slane %v493, 6
        %v513 = vrot.slane %v494, 6
        %v514 = vsel %vm511, %v512, %v513
        %v515 = vrot.slane %v495, 6
        %v516 = vsel %vm511, %v513, %v515
        %v517 = vrot.slane %v496, 6
        %v518 = vsel %vm511, %v515, %v517
        %519 = vrot.lane.b32.xlu0 %v512, 2
        %v520 = vpop.permute.xlu0 %519
        %521 = vrot.lane.b32.xlu0 %v514, 2
        %v522 = vpop.permute.xlu0 %521
        %523 = vrot.lane.b32.xlu0 %v516, 2
        %v524 = vpop.permute.xlu0 %523
        %525 = vrot.lane.b32.xlu0 %v518, 2
        %v526 = vpop.permute.xlu0 %525
        %vm531 = vcmask 244754
        %532 = vst.msk [vmem:[#allocation2] sm:$0xfc] %vm531, %v520
        %vm533 = vcmask 244752
        %534 = vst.msk [vmem:[#allocation2 + $0x10] sm:$0xff] %vm533, %v522
        %535 = vst.msk [vmem:[#allocation2 + $0x20] sm:$0xff] %vm533, %v524
        %vm536 = vcmask 240656
        %537 = vst.msk [vmem:[#allocation2 + $0x30] sm:$0xf] %vm536, %v526
        %vm538 = vcmask 1040384
        %v539 = vrot.slane %v493, 7
        %v540 = vrot.slane %v494, 7
        %v541 = vsel %vm538, %v539, %v540
        %v542 = vrot.slane %v495, 7
        %v543 = vsel %vm538, %v540, %v542
        %v544 = vrot.slane %v496, 7
        %v545 = vsel %vm538, %v542, %v544
        %546 = vrot.lane.b32.xlu0 %v539, 34
        %v547 = vpop.permute.xlu0 %546
        %548 = vrot.lane.b32.xlu0 %v541, 34
        %v549 = vpop.permute.xlu0 %548
        %550 = vrot.lane.b32.xlu0 %v543, 34
        %v551 = vpop.permute.xlu0 %550
        %552 = vrot.lane.b32.xlu0 %v545, 34
        %v553 = vpop.permute.xlu0 %552
        %vm558 = vcmask 507153
        %559 = vst.msk [vmem:[#allocation2] sm:$0xfe] %vm558, %v547
        %vm560 = vcmask 507152
        %561 = vst.msk [vmem:[#allocation2 + $0x10] sm:$0xff] %vm560, %v549
        %562 = vst.msk [vmem:[#allocation2 + $0x20] sm:$0xff] %vm560, %v551
        %vm563 = vcmask 503056
        %564 = vst.msk [vmem:[#allocation2 + $0x30] sm:$0xf] %vm563, %v553
        %565 = vrot.lane.b32.xlu0 %v493, 66
        %v566 = vpop.permute.xlu0 %565
        %567 = vrot.lane.b32.xlu0 %v494, 66
        %v568 = vpop.permute.xlu0 %567
        %569 = vrot.lane.b32.xlu0 %v495, 66
        %v570 = vpop.permute.xlu0 %569
        %571 = vrot.lane.b32.xlu0 %v496, 66
        %v572 = vpop.permute.xlu0 %571
        %vm577 = vcmask 769552
        %578 = vst.msk [vmem:[#allocation2] sm:$0xff] %vm577, %v566
        %579 = vst.msk [vmem:[#allocation2 + $0x10] sm:$0xff] %vm577, %v568
        %580 = vst.msk [vmem:[#allocation2 + $0x20] sm:$0xff] %vm577, %v570
        %vm581 = vcmask 765456
        %582 = vst.msk [vmem:[#allocation2 + $0x30] sm:$0xf] %vm581, %v572
        %vm583 = vcmask 1046528
        %v584 = vrot.slane %v493, 1
        %v585 = vrot.slane %v494, 1
        %v586 = vsel %vm583, %v584, %v585
        %v587 = vrot.slane %v495, 1
        %v588 = vsel %vm583, %v585, %v587
        %v589 = vrot.slane %v496, 1
        %v590 = vsel %vm583, %v587, %v589
        %591 = vrot.lane.b32.xlu0 %v586, 98
        %v592 = vpop.permute.xlu0 %591
        %593 = vrot.lane.b32.xlu0 %v588, 98
        %v594 = vpop.permute.xlu0 %593
        %595 = vrot.lane.b32.xlu0 %v590, 98
        %v596 = vpop.permute.xlu0 %595
        %597 = vrot.lane.b32.xlu0 %v589, 98
        %v598 = vpop.permute.xlu0 %597
        %vm603 = vcmask 1031952
        %604 = vst.msk [vmem:[#allocation2] sm:$0xff] %vm603, %v592
        %605 = vst.msk [vmem:[#allocation2 + $0x10] sm:$0xff] %vm603, %v594
        %606 = vst.msk [vmem:[#allocation2 + $0x20] sm:$0xff] %vm603, %v596
        %vm607 = vcmask 1026832
        %608 = vst.msk [vmem:[#allocation2 + $0x30] sm:$0x7] %vm607, %v598
        %vm609 = vcmask 1045504
        %v610 = vrot.slane %v493, 2
        %v611 = vrot.slane %v494, 2
        %v612 = vsel %vm609, %v610, %v611
        %v613 = vrot.slane %v495, 2
        %v614 = vsel %vm609, %v611, %v613
        %v615 = vrot.slane %v496, 2
        %v616 = vsel %vm609, %v613, %v615
        %617 = vrot.lane.b32.xlu0 %v612, 2
        %v618 = vpop.permute.xlu0 %617
        %619 = vrot.lane.b32.xlu0 %v614, 2
        %v620 = vpop.permute.xlu0 %619
        %621 = vrot.lane.b32.xlu0 %v616, 2
        %v622 = vpop.permute.xlu0 %621
        %623 = vrot.lane.b32.xlu0 %v615, 2
        %v624 = vpop.permute.xlu0 %623
        %629 = vst.msk [vmem:[#allocation2 + $0x8] sm:$0xff] %vm533, %v618
        %630 = vst.msk [vmem:[#allocation2 + $0x18] sm:$0xff] %vm533, %v620
        %631 = vst.msk [vmem:[#allocation2 + $0x28] sm:$0xff] %vm533, %v622
        %vm632 = vcmask 238608
        %633 = vst.msk [vmem:[#allocation2 + $0x38] sm:$0x3] %vm632, %v624
        %v634 = vld [vmem:[#allocation2] sm:$0xff]
        %v635 = vld [vmem:[#allocation2 + $0x8] sm:$0xff]
        %v636 = vld [vmem:[#allocation2 + $0x10] sm:$0xff]
        %v637 = vld [vmem:[#allocation2 + $0x18] sm:$0xff]
        %v638 = vld [vmem:[#allocation2 + $0x20] sm:$0xff]
        %v639 = vld [vmem:[#allocation2 + $0x28] sm:$0xff]
        %v640 = vld [vmem:[#allocation2 + $0x30] sm:$0xf]
        %v641 = vld [vmem:[#allocation2 + $0x38] sm:$0xf]
        %v642 = vpack.c.bf16 %v636, %v634
        %v643 = vpack.c.bf16 %v637, %v635
        %v644 = vpack.c.bf16 %v640, %v638
        %v645 = vpack.c.bf16 %v641, %v639
        %v646 = vld [vmem:[%s1] sm:$0xff]
        %v647 = vld [vmem:[%s1 + $0x8] sm:$0xff]
        %v648 = vld [vmem:[%s1 + $0x10] sm:$0xff]
        %v649 = vld [vmem:[%s1 + $0x18] sm:$0xff]
        %v650 = vld [vmem:[%s1 + $0x20] sm:$0xff]
        %v651 = vld [vmem:[%s1 + $0x28] sm:$0xff]
        %v652 = vld [vmem:[%s1 + $0x30] sm:$0xff]
        %v653 = vld [vmem:[%s1 + $0x38] sm:$0xff]
        %v654 = vld [vmem:[%s1 + $0x40] sm:$0xff]
        %v655 = vld [vmem:[%s1 + $0x48] sm:$0xff]
        %v656 = vld [vmem:[%s1 + $0x50] sm:$0xff]
        %v657 = vld [vmem:[%s1 + $0x58] sm:$0xff]
        %v658 = vld [vmem:[%s1 + $0x60] sm:$0xff]
        %v659 = vld [vmem:[%s1 + $0x68] sm:$0xff]
        %v660 = vld [vmem:[%s1 + $0x70] sm:$0xff]
        %v661 = vld [vmem:[%s1 + $0x78] sm:$0xff]
        %v662 = vld [vmem:[%s1 + $0x80] sm:$0xff]
        %v663 = vld [vmem:[%s1 + $0x88] sm:$0xff]
        %v664 = vld [vmem:[%s1 + $0x90] sm:$0xff]
        %v665 = vld [vmem:[%s1 + $0x98] sm:$0xff]
        %v666 = vld [vmem:[%s2] sm:$0x3]
        %v668 = vlaneseq
        %v669 = vshrl.u32 %v668, 7
        %v670 = vsub.s32 0, %v669
        %v671 = vrot.slane %v666, %v670
        %v672 = vlaneseq
        %v673 = vshrl.u32 %v672, 7
        %v674 = vsub.s32 1, %v673
        %v675 = vrot.slane %v666, %v674
        %v698 = vunpack.c.l.b16 %v646
        %v699 = vunpack.c.h.b16 %v646
        %v700 = vunpack.c.l.b16 %v647
        %v701 = vunpack.c.h.b16 %v647
        %v702 = vunpack.c.l.b16 %v648
        %v703 = vunpack.c.h.b16 %v648
        %v704 = vunpack.c.l.b16 %v649
        %v705 = vunpack.c.h.b16 %v649
        %v706 = vunpack.c.l.b16 %v650
        %v707 = vunpack.c.h.b16 %v650
        %v708 = vunpack.c.l.b16 %v651
        %v709 = vunpack.c.h.b16 %v651
        %v710 = vunpack.c.l.b16 %v652
        %v711 = vunpack.c.h.b16 %v652
        %v712 = vunpack.c.l.b16 %v653
        %v713 = vunpack.c.h.b16 %v653
        %v714 = vunpack.c.l.b16 %v654
        %v715 = vunpack.c.h.b16 %v654
        %v716 = vunpack.c.l.b16 %v655
        %v717 = vunpack.c.h.b16 %v655
        %v718 = vunpack.c.l.b16 %v656
        %v719 = vunpack.c.h.b16 %v656
        %v720 = vunpack.c.l.b16 %v657
        %v721 = vunpack.c.h.b16 %v657
        %v722 = vunpack.c.l.b16 %v658
        %v723 = vunpack.c.h.b16 %v658
        %v724 = vunpack.c.l.b16 %v659
        %v725 = vunpack.c.h.b16 %v659
        %v726 = vunpack.c.l.b16 %v660
        %v727 = vunpack.c.h.b16 %v660
        %v728 = vunpack.c.l.b16 %v661
        %v729 = vunpack.c.h.b16 %v661
        %v730 = vunpack.c.l.b16 %v662
        %v731 = vunpack.c.h.b16 %v662
        %v732 = vunpack.c.l.b16 %v663
        %v733 = vunpack.c.h.b16 %v663
        %v734 = vunpack.c.l.b16 %v664
        %v735 = vunpack.c.h.b16 %v664
        %v736 = vunpack.c.l.b16 %v665
        %v737 = vunpack.c.h.b16 %v665
        %v738 = vpack.c.b16 %v700, %v698
        %v739 = vpack.c.b16 %v701, %v699
        %v740 = vpack.c.b16 %v704, %v702
        %v741 = vpack.c.b16 %v705, %v703
        %v742 = vpack.c.b16 %v708, %v706
        %v743 = vpack.c.b16 %v709, %v707
        %v744 = vpack.c.b16 %v712, %v710
        %v745 = vpack.c.b16 %v713, %v711
        %v746 = vpack.c.b16 %v716, %v714
        %v747 = vpack.c.b16 %v717, %v715
        %v748 = vpack.c.b16 %v720, %v718
        %v749 = vpack.c.b16 %v721, %v719
        %v750 = vpack.c.b16 %v724, %v722
        %v751 = vpack.c.b16 %v725, %v723
        %v752 = vpack.c.b16 %v728, %v726
        %v753 = vpack.c.b16 %v729, %v727
        %v754 = vpack.c.b16 %v732, %v730
        %v755 = vpack.c.b16 %v733, %v731
        %v756 = vpack.c.b16 %v736, %v734
        %v757 = vpack.c.b16 %v737, %v735
        %v779 = vsel %vm498, %v643, 0
        %v782 = vsel %vm498, %v645, 0
        %784 = vmatprep.subr.bf16.mxu0 %v753
        %785 = vmatpush1.bf16.msra.mxu0 %v752
        %786 = vmatprep.subr.bf16.mxu0 %v751
        %787 = vmatpush1.bf16.msra.mxu0 %v750
        %788 = vmatprep.subr.bf16.mxu0 %v749
        %789 = vmatpush1.bf16.msra.mxu0 %v748
        %790 = vmatprep.subr.bf16.mxu0 %v747
        %791 = vmatpush1.bf16.msra.mxu0 %v746
        %792 = vmatprep.subr.bf16.mxu0 %v745
        %793 = vmatpush1.bf16.msra.mxu0 %v744
        %794 = vmatprep.subr.bf16.mxu0 %v743
        %795 = vmatpush1.bf16.msra.mxu0 %v742
        %796 = vmatprep.subr.bf16.mxu0 %v741
        %797 = vmatpush1.bf16.msra.mxu0 %v740
        %798 = vmatprep.subr.bf16.mxu0 %v739
        %799 = vmatpush1.bf16.msra.mxu0 %v738
        %800 = vmatprep.subr.bf16.mxu0 0
        %801 = vmatpush2.bf16.msra.mxu0 0
        %802 = vmatprep.subr.bf16.mxu0 0
        %803 = vmatpush2.bf16.msra.mxu0 0
        %804 = vmatprep.subr.bf16.mxu0 0
        %805 = vmatpush2.bf16.msra.mxu0 0
        %806 = vmatprep.subr.bf16.mxu0 0
        %807 = vmatpush2.bf16.msra.mxu0 0
        %808 = vmatprep.subr.bf16.mxu0 0
        %809 = vmatpush2.bf16.msra.mxu0 0
        %810 = vmatprep.subr.bf16.mxu0 0
        %811 = vmatpush2.bf16.msra.mxu0 0
        %812 = vmatprep.subr.bf16.mxu0 %v757
        %813 = vmatpush2.bf16.msra.mxu0 %v756
        %814 = vmatprep.subr.bf16.mxu0 %v755
        %815 = vmatpush2.bf16.msra.mxu0 %v754
        %816 = vmatprep.mubr.bf16.mxu0 %v779
        %817 = vmatmul.mubr.bf16.gmra.mxu0 %v642
        %v818 = vpop.f32.mrf.mxu0
        %v819 = vadd.f32 %v671, %v818
        %v820 = vpop.f32.mrf.mxu0
        %v821 = vadd.f32 %v675, %v820
        %v822 = vpop.f32.mrf.mxu0
        %v823 = vadd.f32 %v671, %v822
        %v824 = vpop.f32.mrf.mxu0
        %v825 = vadd.f32 %v675, %v824
        %826 = vmatprep.mubr.bf16.mxu0 %v782
        %827 = vmatmul.mubr.bf16.gmra.mxu0 %v644
        %v828 = vpop.f32.mrf.mxu0
        %v829 = vadd.f32 %v671, %v828
        %v830 = vpop.f32.mrf.mxu0
        %v831 = vadd.f32 %v675, %v830
        %v832 = vpop.f32.mrf.mxu0
        %v833 = vadd.f32 %v671, %v832
        %v834 = vpop.f32.mrf.mxu0
        %v835 = vadd.f32 %v675, %v834
        %836 = vdwg.mxu0
        %v837 = vmax.f32 %v819, 0.0
        %v838 = vmax.f32 %v821, 0.0
        %v839 = vmax.f32 %v823, 0.0
        %v840 = vmax.f32 %v825, 0.0
        %v841 = vmax.f32 %v829, 0.0
        %v842 = vmax.f32 %v831, 0.0
        %v843 = vmax.f32 %v833, 0.0
        %v844 = vmax.f32 %v835, 0.0
        %v853 = vrot.slane %v837, 1
        %v854 = vrot.slane %v839, 1
        %v855 = vsel %vm583, %v853, %v854
        %v856 = vrot.slane %v838, 1
        %v857 = vrot.slane %v840, 1
        %v858 = vsel %vm583, %v856, %v857
        %v859 = vrot.slane %v841, 1
        %v860 = vsel %vm583, %v854, %v859
        %v861 = vrot.slane %v842, 1
        %v862 = vsel %vm583, %v857, %v861
        %v863 = vrot.slane %v843, 1
        %v864 = vsel %vm583, %v859, %v863
        %v865 = vrot.slane %v844, 1
        %v866 = vsel %vm583, %v861, %v865
        %v875 = vmax.f32 %v837, %v855
        %v876 = vmax.f32 %v838, %v858
        %v877 = vmax.f32 %v839, %v860
        %v878 = vmax.f32 %v840, %v862
        %v879 = vmax.f32 %v841, %v864
        %v880 = vmax.f32 %v842, %v866
        %v881 = vmax.f32 %v843, %v863
        %v882 = vmax.f32 %v844, %v865
        %v883 = vpack.c.bf16 %v877, %v875
        %v884 = vpack.c.bf16 %v878, %v876
        %v885 = vpack.c.bf16 %v881, %v879
        %v886 = vpack.c.bf16 %v882, %v880
        %v887 = vld [vmem:[%s3] sm:$0xf]
        %v888 = vld [vmem:[%s3 + $0x4] sm:$0x7]
        %v891 = vunpack.c.l.b16 %v887
        %v892 = vunpack.c.l.b16 %v888
        %v893 = vpack.c.b16 %v892, %v891
        %vm894 = vcmask 220160
        %v896 = vsel %vm894, %v893, 0
        %vm898 = vcmask 1044480
        %v899 = vsel %vm898, 4294967295, 65535
        %v900 = vsel %vm609, %v899, 0
        %v902 = vand.u32 %v885, %v900
        %v905 = vand.u32 %v886, %v900
        %907 = vmatprep.subr.bf16.mxu0 0
        %908 = vmatpush1.bf16.msra.mxu0 0
        %909 = vmatprep.subr.bf16.mxu0 0
        %910 = vmatpush1.bf16.msra.mxu0 0
        %911 = vmatprep.subr.bf16.mxu0 0
        %912 = vmatpush1.bf16.msra.mxu0 0
        %913 = vmatprep.subr.bf16.mxu0 0
        %914 = vmatpush1.bf16.msra.mxu0 0
        %915 = vmatprep.subr.bf16.mxu0 0
        %916 = vmatpush1.bf16.msra.mxu0 0
        %917 = vmatprep.subr.bf16.mxu0 0
        %918 = vmatpush1.bf16.msra.mxu0 0
        %919 = vmatprep.subr.bf16.mxu0 %v905
        %920 = vmatpush1.bf16.msra.mxu0 %v902
        %921 = vmatprep.subr.bf16.mxu0 %v884
        %922 = vmatpush1.bf16.msra.mxu0 %v883
        %923 = vmatprep.subr.bf16.mxu0 0
        %924 = vmatpush2.bf16.msra.mxu0 0
        %925 = vmatprep.subr.bf16.mxu0 0
        %926 = vmatpush2.bf16.msra.mxu0 0
        %927 = vmatprep.subr.bf16.mxu0 0
        %928 = vmatpush2.bf16.msra.mxu0 0
        %929 = vmatprep.subr.bf16.mxu0 0
        %930 = vmatpush2.bf16.msra.mxu0 0
        %931 = vmatprep.subr.bf16.mxu0 0
        %932 = vmatpush2.bf16.msra.mxu0 0
        %933 = vmatprep.subr.bf16.mxu0 0
        %934 = vmatpush2.bf16.msra.mxu0 0
        %935 = vmatprep.subr.bf16.mxu0 0
        %936 = vmatpush2.bf16.msra.mxu0 0
        %937 = vmatprep.subr.bf16.mxu0 0
        %938 = vmatpush2.bf16.msra.mxu0 0
        %939 = vmatprep.mubr.bf16.mxu0 0
        %940 = vmatmul.mubr.bf16.gmra.mxu0 %v896
        %v941 = vpop.f32.mrf.mxu0
        %v942 = vadd.f32 0.0, %v941
        %v943 = vpop.f32.mrf.mxu0
        %v944 = vadd.f32 0.0, %v943
        %v945 = vpop.f32.mrf.mxu0
        %v946 = vadd.f32 0.0, %v945
        %v947 = vpop.f32.mrf.mxu0
        %v948 = vadd.f32 0.0, %v947
        %949 = vdwg.mxu0
        %954 = vrot.lane.b32.xlu0 %v942, 127
        %v955 = vpop.permute.xlu0 %954
        %956 = vrot.lane.b32.xlu0 %v944, 127
        %v957 = vpop.permute.xlu0 %956
        %958 = vrot.lane.b32.xlu0 %v946, 127
        %v959 = vpop.permute.xlu0 %958
        %960 = vrot.lane.b32.xlu0 %v948, 127
        %v961 = vpop.permute.xlu0 %960
        %vm962 = vcmask 1039360
        %v963 = vsel %vm962, %v955, %v957
        %v964 = vsel %vm962, %v959, %v961
        %v969 = vmax.f32 %v942, %v963
        %v970 = vmax.f32 %v944, %v957
        %v971 = vmax.f32 %v946, %v964
        %v972 = vmax.f32 %v948, %v961
        %v973 = vpack.c.bf16 %v971, %v969
        %v974 = vpack.c.bf16 %v972, %v970
        %v975 = vld [vmem:[%s4] sm:$0xf]
        %v976 = vld [vmem:[%s4 + $0x4] sm:$0xf]
        %v977 = vld [vmem:[%s4 + $0x8] sm:$0xf]
        %v978 = vld [vmem:[%s4 + $0xc] sm:$0xf]
        %v979 = vld [vmem:[%s4 + $0x10] sm:$0xf]
        %v980 = vld [vmem:[%s4 + $0x14] sm:$0xf]
        %v981 = vld [vmem:[%s4 + $0x18] sm:$0xf]
        %v982 = vld [vmem:[%s4 + $0x1c] sm:$0xf]
        %v983 = vld [vmem:[%s4 + $0x20] sm:$0xf]
        %v984 = vld [vmem:[%s4 + $0x24] sm:$0xf]
        %v985 = vld [vmem:[%s4 + $0x28] sm:$0xf]
        %v986 = vld [vmem:[%s4 + $0x2c] sm:$0xf]
        %v987 = vld [vmem:[%s4 + $0x30] sm:$0xf]
        %v988 = vld [vmem:[%s4 + $0x34] sm:$0xf]
        %v989 = vld [vmem:[%s4 + $0x38] sm:$0xf]
        %v990 = vld [vmem:[%s4 + $0x3c] sm:$0xf]
        %v991 = vld [vmem:[%s4 + $0x40] sm:$0xf]
        %v992 = vld [vmem:[%s4 + $0x44] sm:$0xf]
        %v993 = vld [vmem:[%s4 + $0x48] sm:$0xf]
        %v994 = vld [vmem:[%s4 + $0x4c] sm:$0xf]
        %v995 = vld [vmem:[%s4 + $0x50] sm:$0xf]
        %v996 = vld [vmem:[%s4 + $0x54] sm:$0xf]
        %v997 = vld [vmem:[%s4 + $0x58] sm:$0xf]
        %v998 = vld [vmem:[%s4 + $0x5c] sm:$0xf]
        %v999 = vld [vmem:[%s4 + $0x60] sm:$0xf]
        %v1000 = vld [vmem:[%s4 + $0x64] sm:$0xf]
        %v1001 = vld [vmem:[%s4 + $0x68] sm:$0xf]
        %v1002 = vld [vmem:[%s4 + $0x6c] sm:$0xf]
        %v1031 = vunpack.c.l.b16 %v975
        %v1032 = vunpack.c.l.b16 %v976
        %v1033 = vunpack.c.l.b16 %v977
        %v1034 = vunpack.c.l.b16 %v978
        %v1035 = vunpack.c.l.b16 %v979
        %v1036 = vunpack.c.l.b16 %v980
        %v1037 = vunpack.c.l.b16 %v981
        %v1038 = vunpack.c.l.b16 %v982
        %v1039 = vunpack.c.l.b16 %v983
        %v1040 = vunpack.c.l.b16 %v984
        %v1041 = vunpack.c.l.b16 %v985
        %v1042 = vunpack.c.l.b16 %v986
        %v1043 = vunpack.c.l.b16 %v987
        %v1044 = vunpack.c.l.b16 %v988
        %v1045 = vunpack.c.l.b16 %v989
        %v1046 = vunpack.c.l.b16 %v990
        %v1047 = vunpack.c.l.b16 %v991
        %v1048 = vunpack.c.l.b16 %v992
        %v1049 = vunpack.c.l.b16 %v993
        %v1050 = vunpack.c.l.b16 %v994
        %v1051 = vunpack.c.l.b16 %v995
        %v1052 = vunpack.c.l.b16 %v996
        %v1053 = vunpack.c.l.b16 %v997
        %v1054 = vunpack.c.l.b16 %v998
        %v1055 = vunpack.c.l.b16 %v999
        %v1056 = vunpack.c.l.b16 %v1000
        %v1057 = vunpack.c.l.b16 %v1001
        %v1058 = vunpack.c.l.b16 %v1002
        %v1059 = vpack.c.b16 %v1032, %v1031
        %v1060 = vpack.c.b16 %v1034, %v1033
        %v1061 = vpack.c.b16 %v1036, %v1035
        %v1062 = vpack.c.b16 %v1038, %v1037
        %v1063 = vpack.c.b16 %v1040, %v1039
        %v1064 = vpack.c.b16 %v1042, %v1041
        %v1065 = vpack.c.b16 %v1044, %v1043
        %v1066 = vpack.c.b16 %v1046, %v1045
        %v1067 = vpack.c.b16 %v1048, %v1047
        %v1068 = vpack.c.b16 %v1050, %v1049
        %v1069 = vpack.c.b16 %v1052, %v1051
        %v1070 = vpack.c.b16 %v1054, %v1053
        %v1071 = vpack.c.b16 %v1056, %v1055
        %v1072 = vpack.c.b16 %v1058, %v1057
        %vm1086 = vcmask 777216
        %v1088 = vsel %vm1086, %v974, 0
        %vm1090 = vcmask 1047552
        %v1091 = vsel %vm583, 4294967295, 65535
        %v1092 = vsel %vm1090, %v1091, 0
        %v1094 = vand.u32 %v1072, %v1092
        %1096 = vmatprep.subr.bf16.mxu0 0
        %1097 = vmatpush1.bf16.msra.mxu0 %v1066
        %1098 = vmatprep.subr.bf16.mxu0 0
        %1099 = vmatpush1.bf16.msra.mxu0 %v1065
        %1100 = vmatprep.subr.bf16.mxu0 0
        %1101 = vmatpush1.bf16.msra.mxu0 %v1064
        %1102 = vmatprep.subr.bf16.mxu0 0
        %1103 = vmatpush1.bf16.msra.mxu0 %v1063
        %1104 = vmatprep.subr.bf16.mxu0 0
        %1105 = vmatpush1.bf16.msra.mxu0 %v1062
        %1106 = vmatprep.subr.bf16.mxu0 0
        %1107 = vmatpush1.bf16.msra.mxu0 %v1061
        %1108 = vmatprep.subr.bf16.mxu0 0
        %1109 = vmatpush1.bf16.msra.mxu0 %v1060
        %1110 = vmatprep.subr.bf16.mxu0 0
        %1111 = vmatpush1.bf16.msra.mxu0 %v1059
        %1112 = vmatprep.subr.bf16.mxu0 0
        %1113 = vmatpush2.bf16.msra.mxu0 0
        %1114 = vmatprep.subr.bf16.mxu0 0
        %1115 = vmatpush2.bf16.msra.mxu0 0
        %1116 = vmatprep.subr.bf16.mxu0 0
        %1117 = vmatpush2.bf16.msra.mxu0 %v1094
        %1118 = vmatprep.subr.bf16.mxu0 0
        %1119 = vmatpush2.bf16.msra.mxu0 %v1071
        %1120 = vmatprep.subr.bf16.mxu0 0
        %1121 = vmatpush2.bf16.msra.mxu0 %v1070
        %1122 = vmatprep.subr.bf16.mxu0 0
        %1123 = vmatpush2.bf16.msra.mxu0 %v1069
        %1124 = vmatprep.subr.bf16.mxu0 0
        %1125 = vmatpush2.bf16.msra.mxu0 %v1068
        %1126 = vmatprep.subr.bf16.mxu0 0
        %1127 = vmatpush2.bf16.msra.mxu0 %v1067
        %1128 = vmatprep.mubr.bf16.mxu0 %v1088
        %1129 = vmatmul.mubr.bf16.gmra.mxu0 %v973
        %v1130 = vpop.f32.mrf.mxu0
        %v1131 = vadd.f32 0.0, %v1130
        %v1132 = vpop.f32.mrf.mxu0
        %v1133 = vpop.f32.mrf.mxu0
        %v1134 = vadd.f32 0.0, %v1133
        %v1135 = vpop.f32.mrf.mxu0
        %1136 = vdwg.mxu0
        %v1137 = vpack.c.bf16 %v1134, %v1131
        %v1138 = vld [vmem:[%s5] sm:$0xff]
        %v1139 = vld [vmem:[%s5 + $0x8] sm:$0xff]
        %v1140 = vld [vmem:[%s5 + $0x10] sm:$0xff]
        %v1141 = vld [vmem:[%s5 + $0x18] sm:$0xff]
        %v1142 = vld [vmem:[%s5 + $0x20] sm:$0xff]
        %v1143 = vld [vmem:[%s5 + $0x28] sm:$0xff]
        %v1144 = vld [vmem:[%s5 + $0x30] sm:$0xff]
        %v1145 = vld [vmem:[%s5 + $0x38] sm:$0xff]
        %v1146 = vld [vmem:[%s5 + $0x40] sm:$0xff]
        %v1147 = vld [vmem:[%s5 + $0x48] sm:$0xff]
        %v1148 = vld [vmem:[%s5 + $0x50] sm:$0xff]
        %v1149 = vld [vmem:[%s5 + $0x58] sm:$0xff]
        %v1150 = vld [vmem:[%s5 + $0x60] sm:$0xff]
        %v1151 = vld [vmem:[%s5 + $0x68] sm:$0xff]
        %s1152 = scalar_lea.vmem %s5, 112
        %v1153 = vld [vmem:[%s1152] sm:$0xff]
        %v1154 = vld [vmem:[%s1152 + $0x8] sm:$0xff]
        %v1155 = vld [vmem:[%s1152 + $0x10] sm:$0xff]
        %v1156 = vld [vmem:[%s1152 + $0x18] sm:$0xff]
        %v1157 = vld [vmem:[%s1152 + $0x20] sm:$0xff]
        %v1158 = vld [vmem:[%s1152 + $0x28] sm:$0xff]
        %v1159 = vld [vmem:[%s1152 + $0x30] sm:$0xff]
        %v1160 = vld [vmem:[%s1152 + $0x38] sm:$0xff]
        %v1161 = vld [vmem:[%s1152 + $0x40] sm:$0xff]
        %v1162 = vld [vmem:[%s1152 + $0x48] sm:$0xff]
        %v1163 = vld [vmem:[%s1152 + $0x50] sm:$0xff]
        %v1164 = vld [vmem:[%s1152 + $0x58] sm:$0xff]
        %v1165 = vld [vmem:[%s1152 + $0x60] sm:$0xff]
        %v1166 = vld [vmem:[%s1152 + $0x68] sm:$0xff]
        %v1168 = vshrl.u32 %v1137, 16
        %v1170 = vshll.u32 %v1137, 16
        %v1172 = vrot.slane %v1170, 1
        %v1173 = vor.u32 %v1168, %v1172
        %v1188 = vunpack.c.l.b16 %v1153
        %v1189 = vunpack.c.h.b16 %v1153
        %v1190 = vunpack.c.l.b16 %v1154
        %v1191 = vunpack.c.h.b16 %v1154
        %v1192 = vunpack.c.l.b16 %v1155
        %v1193 = vunpack.c.h.b16 %v1155
        %v1194 = vunpack.c.l.b16 %v1156
        %v1195 = vunpack.c.h.b16 %v1156
        %v1196 = vunpack.c.l.b16 %v1157
        %v1197 = vunpack.c.h.b16 %v1157
        %v1198 = vunpack.c.l.b16 %v1158
        %v1199 = vunpack.c.h.b16 %v1158
        %v1200 = vunpack.c.l.b16 %v1159
        %v1201 = vunpack.c.h.b16 %v1159
        %v1202 = vunpack.c.l.b16 %v1160
        %v1203 = vunpack.c.h.b16 %v1160
        %v1204 = vunpack.c.l.b16 %v1161
        %v1205 = vunpack.c.h.b16 %v1161
        %v1206 = vunpack.c.l.b16 %v1162
        %v1207 = vunpack.c.h.b16 %v1162
        %v1208 = vunpack.c.l.b16 %v1163
        %v1209 = vunpack.c.h.b16 %v1163
        %v1210 = vunpack.c.l.b16 %v1164
        %v1211 = vunpack.c.h.b16 %v1164
        %v1212 = vunpack.c.l.b16 %v1165
        %v1213 = vunpack.c.h.b16 %v1165
        %v1214 = vunpack.c.l.b16 %v1166
        %v1215 = vunpack.c.h.b16 %v1166
        %v1216 = vpack.c.b16 %v1190, %v1188
        %v1217 = vpack.c.b16 %v1191, %v1189
        %v1218 = vpack.c.b16 %v1194, %v1192
        %v1219 = vpack.c.b16 %v1195, %v1193
        %v1220 = vpack.c.b16 %v1198, %v1196
        %v1221 = vpack.c.b16 %v1199, %v1197
        %v1222 = vpack.c.b16 %v1202, %v1200
        %v1223 = vpack.c.b16 %v1203, %v1201
        %v1224 = vpack.c.b16 %v1206, %v1204
        %v1225 = vpack.c.b16 %v1207, %v1205
        %v1226 = vpack.c.b16 %v1210, %v1208
        %v1227 = vpack.c.b16 %v1211, %v1209
        %v1228 = vpack.c.b16 %v1214, %v1212
        %v1229 = vpack.c.b16 %v1215, %v1213
        %vm1244 = vcmask 916480
        %v1246 = vsel %vm1244, %v1173, 0
        %1248 = vmatprep.subr.bf16.mxu0 0
        %1249 = vmatpush1.bf16.msra.mxu0 0
        %1250 = vmatprep.subr.bf16.mxu0 %v1229
        %1251 = vmatpush1.bf16.msra.mxu0 %v1228
        %1252 = vmatprep.subr.bf16.mxu0 %v1227
        %1253 = vmatpush1.bf16.msra.mxu0 %v1226
        %1254 = vmatprep.subr.bf16.mxu0 %v1225
        %1255 = vmatpush1.bf16.msra.mxu0 %v1224
        %1256 = vmatprep.subr.bf16.mxu0 %v1223
        %1257 = vmatpush1.bf16.msra.mxu0 %v1222
        %1258 = vmatprep.subr.bf16.mxu0 %v1221
        %1259 = vmatpush1.bf16.msra.mxu0 %v1220
        %1260 = vmatprep.subr.bf16.mxu0 %v1219
        %1261 = vmatpush1.bf16.msra.mxu0 %v1218
        %1262 = vmatprep.subr.bf16.mxu0 %v1217
        %1263 = vmatpush1.bf16.msra.mxu0 %v1216
        %1264 = vmatprep.subr.bf16.mxu0 0
        %1265 = vmatpush2.bf16.msra.mxu0 0
        %1266 = vmatprep.subr.bf16.mxu0 0
        %1267 = vmatpush2.bf16.msra.mxu0 0
        %1268 = vmatprep.subr.bf16.mxu0 0
        %1269 = vmatpush2.bf16.msra.mxu0 0
        %1270 = vmatprep.subr.bf16.mxu0 0
        %1271 = vmatpush2.bf16.msra.mxu0 0
        %1272 = vmatprep.subr.bf16.mxu0 0
        %1273 = vmatpush2.bf16.msra.mxu0 0
        %1274 = vmatprep.subr.bf16.mxu0 0
        %1275 = vmatpush2.bf16.msra.mxu0 0
        %1276 = vmatprep.subr.bf16.mxu0 0
        %1277 = vmatpush2.bf16.msra.mxu0 0
        %1278 = vmatprep.subr.bf16.mxu0 0
        %1279 = vmatpush2.bf16.msra.mxu0 0
        %1280 = vmatprep.mubr.bf16.mxu0 0
        %1281 = vmatmul.mubr.bf16.gmra.mxu0 %v1246
        %v1282 = vpop.f32.mrf.mxu0
        %v1283 = vadd.f32 0.0, %v1282
        %v1284 = vpop.f32.mrf.mxu0
        %v1285 = vadd.f32 0.0, %v1284
        %v1286 = vpop.f32.mrf.mxu0
        %v1287 = vadd.f32 0.0, %v1286
        %v1288 = vpop.f32.mrf.mxu0
        %v1289 = vadd.f32 0.0, %v1288
        %1290 = vdwg.mxu0
        %v1305 = vunpack.c.l.b16 %v1138
        %v1306 = vunpack.c.h.b16 %v1138
        %v1307 = vunpack.c.l.b16 %v1139
        %v1308 = vunpack.c.h.b16 %v1139
        %v1309 = vunpack.c.l.b16 %v1140
        %v1310 = vunpack.c.h.b16 %v1140
        %v1311 = vunpack.c.l.b16 %v1141
        %v1312 = vunpack.c.h.b16 %v1141
        %v1313 = vunpack.c.l.b16 %v1142
        %v1314 = vunpack.c.h.b16 %v1142
        %v1315 = vunpack.c.l.b16 %v1143
        %v1316 = vunpack.c.h.b16 %v1143
        %v1317 = vunpack.c.l.b16 %v1144
        %v1318 = vunpack.c.h.b16 %v1144
        %v1319 = vunpack.c.l.b16 %v1145
        %v1320 = vunpack.c.h.b16 %v1145
        %v1321 = vunpack.c.l.b16 %v1146
        %v1322 = vunpack.c.h.b16 %v1146
        %v1323 = vunpack.c.l.b16 %v1147
        %v1324 = vunpack.c.h.b16 %v1147
        %v1325 = vunpack.c.l.b16 %v1148
        %v1326 = vunpack.c.h.b16 %v1148
        %v1327 = vunpack.c.l.b16 %v1149
        %v1328 = vunpack.c.h.b16 %v1149
        %v1329 = vunpack.c.l.b16 %v1150
        %v1330 = vunpack.c.h.b16 %v1150
        %v1331 = vunpack.c.l.b16 %v1151
        %v1332 = vunpack.c.h.b16 %v1151
        %v1333 = vpack.c.b16 %v1307, %v1305
        %v1334 = vpack.c.b16 %v1308, %v1306
        %v1335 = vpack.c.b16 %v1311, %v1309
        %v1336 = vpack.c.b16 %v1312, %v1310
        %v1337 = vpack.c.b16 %v1315, %v1313
        %v1338 = vpack.c.b16 %v1316, %v1314
        %v1339 = vpack.c.b16 %v1319, %v1317
        %v1340 = vpack.c.b16 %v1320, %v1318
        %v1341 = vpack.c.b16 %v1323, %v1321
        %v1342 = vpack.c.b16 %v1324, %v1322
        %v1343 = vpack.c.b16 %v1327, %v1325
        %v1344 = vpack.c.b16 %v1328, %v1326
        %v1345 = vpack.c.b16 %v1331, %v1329
        %v1346 = vpack.c.b16 %v1332, %v1330
        %v1361 = vsel %vm1244, %v1137, 0
        %1363 = vmatprep.subr.bf16.mxu0 0
        %1364 = vmatpush1.bf16.msra.mxu0 0
        %1365 = vmatprep.subr.bf16.mxu0 %v1346
        %1366 = vmatpush1.bf16.msra.mxu0 %v1345
        %1367 = vmatprep.subr.bf16.mxu0 %v1344
        %1368 = vmatpush1.bf16.msra.mxu0 %v1343
        %1369 = vmatprep.subr.bf16.mxu0 %v1342
        %1370 = vmatpush1.bf16.msra.mxu0 %v1341
        %1371 = vmatprep.subr.bf16.mxu0 %v1340
        %1372 = vmatpush1.bf16.msra.mxu0 %v1339
        %1373 = vmatprep.subr.bf16.mxu0 %v1338
        %1374 = vmatpush1.bf16.msra.mxu0 %v1337
        %1375 = vmatprep.subr.bf16.mxu0 %v1336
        %1376 = vmatpush1.bf16.msra.mxu0 %v1335
        %1377 = vmatprep.subr.bf16.mxu0 %v1334
        %1378 = vmatpush1.bf16.msra.mxu0 %v1333
        %1379 = vmatprep.subr.bf16.mxu0 0
        %1380 = vmatpush2.bf16.msra.mxu0 0
        %1381 = vmatprep.subr.bf16.mxu0 0
        %1382 = vmatpush2.bf16.msra.mxu0 0
        %1383 = vmatprep.subr.bf16.mxu0 0
        %1384 = vmatpush2.bf16.msra.mxu0 0
        %1385 = vmatprep.subr.bf16.mxu0 0
        %1386 = vmatpush2.bf16.msra.mxu0 0
        %1387 = vmatprep.subr.bf16.mxu0 0
        %1388 = vmatpush2.bf16.msra.mxu0 0
        %1389 = vmatprep.subr.bf16.mxu0 0
        %1390 = vmatpush2.bf16.msra.mxu0 0
        %1391 = vmatprep.subr.bf16.mxu0 0
        %1392 = vmatpush2.bf16.msra.mxu0 0
        %1393 = vmatprep.subr.bf16.mxu0 0
        %1394 = vmatpush2.bf16.msra.mxu0 0
        %1395 = vmatprep.mubr.bf16.mxu0 0
        %1396 = vmatmul.mubr.bf16.gmra.mxu0 %v1361
        %v1397 = vpop.f32.mrf.mxu0
        %v1398 = vadd.f32 %v1283, %v1397
        %v1399 = vpop.f32.mrf.mxu0
        %v1400 = vadd.f32 %v1285, %v1399
        %v1401 = vpop.f32.mrf.mxu0
        %v1402 = vadd.f32 %v1287, %v1401
        %v1403 = vpop.f32.mrf.mxu0
        %v1404 = vadd.f32 %v1289, %v1403
        %1405 = vdwg.mxu0
        %s1406 = scalar_lea.vmem %s5, 224
        %v1407 = vld [vmem:[%s1406] sm:$0xff]
        %v1408 = vld [vmem:[%s1406 + $0x8] sm:$0xff]
        %v1409 = vld [vmem:[%s1406 + $0x10] sm:$0xff]
        %v1410 = vld [vmem:[%s1406 + $0x18] sm:$0xff]
        %v1411 = vld [vmem:[%s1406 + $0x20] sm:$0xff]
        %v1412 = vld [vmem:[%s1406 + $0x28] sm:$0xff]
        %v1413 = vld [vmem:[%s1406 + $0x30] sm:$0xff]
        %v1414 = vld [vmem:[%s1406 + $0x38] sm:$0xff]
        %v1415 = vld [vmem:[%s1406 + $0x40] sm:$0xff]
        %v1416 = vld [vmem:[%s1406 + $0x48] sm:$0xff]
        %v1417 = vld [vmem:[%s1406 + $0x50] sm:$0xff]
        %v1418 = vld [vmem:[%s1406 + $0x58] sm:$0xff]
        %v1419 = vld [vmem:[%s1406 + $0x60] sm:$0xff]
        %v1420 = vld [vmem:[%s1406 + $0x68] sm:$0xff]
        %v1422 = vrot.slane %v1137, 1
        %v1437 = vunpack.c.l.b16 %v1407
        %v1438 = vunpack.c.h.b16 %v1407
        %v1439 = vunpack.c.l.b16 %v1408
        %v1440 = vunpack.c.h.b16 %v1408
        %v1441 = vunpack.c.l.b16 %v1409
        %v1442 = vunpack.c.h.b16 %v1409
        %v1443 = vunpack.c.l.b16 %v1410
        %v1444 = vunpack.c.h.b16 %v1410
        %v1445 = vunpack.c.l.b16 %v1411
        %v1446 = vunpack.c.h.b16 %v1411
        %v1447 = vunpack.c.l.b16 %v1412
        %v1448 = vunpack.c.h.b16 %v1412
        %v1449 = vunpack.c.l.b16 %v1413
        %v1450 = vunpack.c.h.b16 %v1413
        %v1451 = vunpack.c.l.b16 %v1414
        %v1452 = vunpack.c.h.b16 %v1414
        %v1453 = vunpack.c.l.b16 %v1415
        %v1454 = vunpack.c.h.b16 %v1415
        %v1455 = vunpack.c.l.b16 %v1416
        %v1456 = vunpack.c.h.b16 %v1416
        %v1457 = vunpack.c.l.b16 %v1417
        %v1458 = vunpack.c.h.b16 %v1417
        %v1459 = vunpack.c.l.b16 %v1418
        %v1460 = vunpack.c.h.b16 %v1418
        %v1461 = vunpack.c.l.b16 %v1419
        %v1462 = vunpack.c.h.b16 %v1419
        %v1463 = vunpack.c.l.b16 %v1420
        %v1464 = vunpack.c.h.b16 %v1420
        %v1465 = vpack.c.b16 %v1439, %v1437
        %v1466 = vpack.c.b16 %v1440, %v1438
        %v1467 = vpack.c.b16 %v1443, %v1441
        %v1468 = vpack.c.b16 %v1444, %v1442
        %v1469 = vpack.c.b16 %v1447, %v1445
        %v1470 = vpack.c.b16 %v1448, %v1446
        %v1471 = vpack.c.b16 %v1451, %v1449
        %v1472 = vpack.c.b16 %v1452, %v1450
        %v1473 = vpack.c.b16 %v1455, %v1453
        %v1474 = vpack.c.b16 %v1456, %v1454
        %v1475 = vpack.c.b16 %v1459, %v1457
        %v1476 = vpack.c.b16 %v1460, %v1458
        %v1477 = vpack.c.b16 %v1463, %v1461
        %v1478 = vpack.c.b16 %v1464, %v1462
        %v1494 = vsel %vm1244, %v1422, 0
        %1496 = vmatprep.subr.bf16.mxu0 0
        %1497 = vmatpush1.bf16.msra.mxu0 0
        %1498 = vmatprep.subr.bf16.mxu0 %v1478
        %1499 = vmatpush1.bf16.msra.mxu0 %v1477
        %1500 = vmatprep.subr.bf16.mxu0 %v1476
        %1501 = vmatpush1.bf16.msra.mxu0 %v1475
        %1502 = vmatprep.subr.bf16.mxu0 %v1474
        %1503 = vmatpush1.bf16.msra.mxu0 %v1473
        %1504 = vmatprep.subr.bf16.mxu0 %v1472
        %1505 = vmatpush1.bf16.msra.mxu0 %v1471
        %1506 = vmatprep.subr.bf16.mxu0 %v1470
        %1507 = vmatpush1.bf16.msra.mxu0 %v1469
        %1508 = vmatprep.subr.bf16.mxu0 %v1468
        %1509 = vmatpush1.bf16.msra.mxu0 %v1467
        %1510 = vmatprep.subr.bf16.mxu0 %v1466
        %1511 = vmatpush1.bf16.msra.mxu0 %v1465
        %1512 = vmatprep.subr.bf16.mxu0 0
        %1513 = vmatpush2.bf16.msra.mxu0 0
        %1514 = vmatprep.subr.bf16.mxu0 0
        %1515 = vmatpush2.bf16.msra.mxu0 0
        %1516 = vmatprep.subr.bf16.mxu0 0
        %1517 = vmatpush2.bf16.msra.mxu0 0
        %1518 = vmatprep.subr.bf16.mxu0 0
        %1519 = vmatpush2.bf16.msra.mxu0 0
        %1520 = vmatprep.subr.bf16.mxu0 0
        %1521 = vmatpush2.bf16.msra.mxu0 0
        %1522 = vmatprep.subr.bf16.mxu0 0
        %1523 = vmatpush2.bf16.msra.mxu0 0
        %1524 = vmatprep.subr.bf16.mxu0 0
        %1525 = vmatpush2.bf16.msra.mxu0 0
        %1526 = vmatprep.subr.bf16.mxu0 0
        %1527 = vmatpush2.bf16.msra.mxu0 0
        %1528 = vmatprep.mubr.bf16.mxu0 0
        %1529 = vmatmul.mubr.bf16.gmra.mxu0 %v1494
        %v1530 = vpop.f32.mrf.mxu0
        %v1531 = vadd.f32 0.0, %v1530
        %v1532 = vpop.f32.mrf.mxu0
        %v1533 = vadd.f32 0.0, %v1532
        %v1534 = vpop.f32.mrf.mxu0
        %v1535 = vadd.f32 0.0, %v1534
        %v1536 = vpop.f32.mrf.mxu0
        %v1537 = vadd.f32 0.0, %v1536
        %1538 = vdwg.mxu0
        %v1539 = vadd.f32 %v1398, %v1531
        %v1540 = vadd.f32 %v1400, %v1533
        %v1541 = vadd.f32 %v1402, %v1535
        %v1542 = vadd.f32 %v1404, %v1537
        %s1543 = scalar_lea.vmem %s5, 336
        %v1544 = vld [vmem:[%s1543] sm:$0xff]
        %v1545 = vld [vmem:[%s1543 + $0x8] sm:$0xff]
        %v1546 = vld [vmem:[%s1543 + $0x10] sm:$0xff]
        %v1547 = vld [vmem:[%s1543 + $0x18] sm:$0xff]
        %v1548 = vld [vmem:[%s1543 + $0x20] sm:$0xff]
        %v1549 = vld [vmem:[%s1543 + $0x28] sm:$0xff]
        %v1550 = vld [vmem:[%s1543 + $0x30] sm:$0xff]
        %v1551 = vld [vmem:[%s1543 + $0x38] sm:$0xff]
        %v1552 = vld [vmem:[%s1543 + $0x40] sm:$0xff]
        %v1553 = vld [vmem:[%s1543 + $0x48] sm:$0xff]
        %v1554 = vld [vmem:[%s1543 + $0x50] sm:$0xff]
        %v1555 = vld [vmem:[%s1543 + $0x58] sm:$0xff]
        %v1556 = vld [vmem:[%s1543 + $0x60] sm:$0xff]
        %v1557 = vld [vmem:[%s1543 + $0x68] sm:$0xff]
        %v1558 = vrot.slane %v1168, 1
        %v1559 = vrot.slane %v1170, 2
        %v1560 = vor.u32 %v1558, %v1559
        %v1575 = vunpack.c.l.b16 %v1544
        %v1576 = vunpack.c.h.b16 %v1544
        %v1577 = vunpack.c.l.b16 %v1545
        %v1578 = vunpack.c.h.b16 %v1545
        %v1579 = vunpack.c.l.b16 %v1546
        %v1580 = vunpack.c.h.b16 %v1546
        %v1581 = vunpack.c.l.b16 %v1547
        %v1582 = vunpack.c.h.b16 %v1547
        %v1583 = vunpack.c.l.b16 %v1548
        %v1584 = vunpack.c.h.b16 %v1548
        %v1585 = vunpack.c.l.b16 %v1549
        %v1586 = vunpack.c.h.b16 %v1549
        %v1587 = vunpack.c.l.b16 %v1550
        %v1588 = vunpack.c.h.b16 %v1550
        %v1589 = vunpack.c.l.b16 %v1551
        %v1590 = vunpack.c.h.b16 %v1551
        %v1591 = vunpack.c.l.b16 %v1552
        %v1592 = vunpack.c.h.b16 %v1552
        %v1593 = vunpack.c.l.b16 %v1553
        %v1594 = vunpack.c.h.b16 %v1553
        %v1595 = vunpack.c.l.b16 %v1554
        %v1596 = vunpack.c.h.b16 %v1554
        %v1597 = vunpack.c.l.b16 %v1555
        %v1598 = vunpack.c.h.b16 %v1555
        %v1599 = vunpack.c.l.b16 %v1556
        %v1600 = vunpack.c.h.b16 %v1556
        %v1601 = vunpack.c.l.b16 %v1557
        %v1602 = vunpack.c.h.b16 %v1557
        %v1603 = vpack.c.b16 %v1577, %v1575
        %v1604 = vpack.c.b16 %v1578, %v1576
        %v1605 = vpack.c.b16 %v1581, %v1579
        %v1606 = vpack.c.b16 %v1582, %v1580
        %v1607 = vpack.c.b16 %v1585, %v1583
        %v1608 = vpack.c.b16 %v1586, %v1584
        %v1609 = vpack.c.b16 %v1589, %v1587
        %v1610 = vpack.c.b16 %v1590, %v1588
        %v1611 = vpack.c.b16 %v1593, %v1591
        %v1612 = vpack.c.b16 %v1594, %v1592
        %v1613 = vpack.c.b16 %v1597, %v1595
        %v1614 = vpack.c.b16 %v1598, %v1596
        %v1615 = vpack.c.b16 %v1601, %v1599
        %v1616 = vpack.c.b16 %v1602, %v1600
        %v1632 = vsel %vm1244, %v1560, 0
        %1634 = vmatprep.subr.bf16.mxu0 0
        %1635 = vmatpush1.bf16.msra.mxu0 0
        %1636 = vmatprep.subr.bf16.mxu0 %v1616
        %1637 = vmatpush1.bf16.msra.mxu0 %v1615
        %1638 = vmatprep.subr.bf16.mxu0 %v1614
        %1639 = vmatpush1.bf16.msra.mxu0 %v1613
        %1640 = vmatprep.subr.bf16.mxu0 %v1612
        %1641 = vmatpush1.bf16.msra.mxu0 %v1611
        %1642 = vmatprep.subr.bf16.mxu0 %v1610
        %1643 = vmatpush1.bf16.msra.mxu0 %v1609
        %1644 = vmatprep.subr.bf16.mxu0 %v1608
        %1645 = vmatpush1.bf16.msra.mxu0 %v1607
        %1646 = vmatprep.subr.bf16.mxu0 %v1606
        %1647 = vmatpush1.bf16.msra.mxu0 %v1605
        %1648 = vmatprep.subr.bf16.mxu0 %v1604
        %1649 = vmatpush1.bf16.msra.mxu0 %v1603
        %1650 = vmatprep.subr.bf16.mxu0 0
        %1651 = vmatpush2.bf16.msra.mxu0 0
        %1652 = vmatprep.subr.bf16.mxu0 0
        %1653 = vmatpush2.bf16.msra.mxu0 0
        %1654 = vmatprep.subr.bf16.mxu0 0
        %1655 = vmatpush2.bf16.msra.mxu0 0
        %1656 = vmatprep.subr.bf16.mxu0 0
        %1657 = vmatpush2.bf16.msra.mxu0 0
        %1658 = vmatprep.subr.bf16.mxu0 0
        %1659 = vmatpush2.bf16.msra.mxu0 0
        %1660 = vmatprep.subr.bf16.mxu0 0
        %1661 = vmatpush2.bf16.msra.mxu0 0
        %1662 = vmatprep.subr.bf16.mxu0 0
        %1663 = vmatpush2.bf16.msra.mxu0 0
        %1664 = vmatprep.subr.bf16.mxu0 0
        %1665 = vmatpush2.bf16.msra.mxu0 0
        %1666 = vmatprep.mubr.bf16.mxu0 0
        %1667 = vmatmul.mubr.bf16.gmra.mxu0 %v1632
        %v1668 = vpop.f32.mrf.mxu0
        %v1669 = vadd.f32 0.0, %v1668
        %v1670 = vpop.f32.mrf.mxu0
        %v1671 = vadd.f32 0.0, %v1670
        %v1672 = vpop.f32.mrf.mxu0
        %v1673 = vadd.f32 0.0, %v1672
        %v1674 = vpop.f32.mrf.mxu0
        %v1675 = vadd.f32 0.0, %v1674
        %1676 = vdwg.mxu0
        %v1677 = vadd.f32 %v1539, %v1669
        %v1678 = vadd.f32 %v1540, %v1671
        %v1679 = vadd.f32 %v1541, %v1673
        %v1680 = vadd.f32 %v1542, %v1675
        %s1681 = scalar_lea.vmem %s5, 448
        %v1682 = vld [vmem:[%s1681] sm:$0xff]
        %v1683 = vld [vmem:[%s1681 + $0x8] sm:$0xff]
        %v1684 = vld [vmem:[%s1681 + $0x10] sm:$0xff]
        %v1685 = vld [vmem:[%s1681 + $0x18] sm:$0xff]
        %v1686 = vld [vmem:[%s1681 + $0x20] sm:$0xff]
        %v1687 = vld [vmem:[%s1681 + $0x28] sm:$0xff]
        %v1688 = vld [vmem:[%s1681 + $0x30] sm:$0xff]
        %v1689 = vld [vmem:[%s1681 + $0x38] sm:$0xff]
        %v1690 = vld [vmem:[%s1681 + $0x40] sm:$0xff]
        %v1691 = vld [vmem:[%s1681 + $0x48] sm:$0xff]
        %v1692 = vld [vmem:[%s1681 + $0x50] sm:$0xff]
        %v1693 = vld [vmem:[%s1681 + $0x58] sm:$0xff]
        %v1694 = vld [vmem:[%s1681 + $0x60] sm:$0xff]
        %v1695 = vld [vmem:[%s1681 + $0x68] sm:$0xff]
        %v1696 = vrot.slane %v1137, 2
        %v1711 = vunpack.c.l.b16 %v1682
        %v1712 = vunpack.c.h.b16 %v1682
        %v1713 = vunpack.c.l.b16 %v1683
        %v1714 = vunpack.c.h.b16 %v1683
        %v1715 = vunpack.c.l.b16 %v1684
        %v1716 = vunpack.c.h.b16 %v1684
        %v1717 = vunpack.c.l.b16 %v1685
        %v1718 = vunpack.c.h.b16 %v1685
        %v1719 = vunpack.c.l.b16 %v1686
        %v1720 = vunpack.c.h.b16 %v1686
        %v1721 = vunpack.c.l.b16 %v1687
        %v1722 = vunpack.c.h.b16 %v1687
        %v1723 = vunpack.c.l.b16 %v1688
        %v1724 = vunpack.c.h.b16 %v1688
        %v1725 = vunpack.c.l.b16 %v1689
        %v1726 = vunpack.c.h.b16 %v1689
        %v1727 = vunpack.c.l.b16 %v1690
        %v1728 = vunpack.c.h.b16 %v1690
        %v1729 = vunpack.c.l.b16 %v1691
        %v1730 = vunpack.c.h.b16 %v1691
        %v1731 = vunpack.c.l.b16 %v1692
        %v1732 = vunpack.c.h.b16 %v1692
        %v1733 = vunpack.c.l.b16 %v1693
        %v1734 = vunpack.c.h.b16 %v1693
        %v1735 = vunpack.c.l.b16 %v1694
        %v1736 = vunpack.c.h.b16 %v1694
        %v1737 = vunpack.c.l.b16 %v1695
        %v1738 = vunpack.c.h.b16 %v1695
        %v1739 = vpack.c.b16 %v1713, %v1711
        %v1740 = vpack.c.b16 %v1714, %v1712
        %v1741 = vpack.c.b16 %v1717, %v1715
        %v1742 = vpack.c.b16 %v1718, %v1716
        %v1743 = vpack.c.b16 %v1721, %v1719
        %v1744 = vpack.c.b16 %v1722, %v1720
        %v1745 = vpack.c.b16 %v1725, %v1723
        %v1746 = vpack.c.b16 %v1726, %v1724
        %v1747 = vpack.c.b16 %v1729, %v1727
        %v1748 = vpack.c.b16 %v1730, %v1728
        %v1749 = vpack.c.b16 %v1733, %v1731
        %v1750 = vpack.c.b16 %v1734, %v1732
        %v1751 = vpack.c.b16 %v1737, %v1735
        %v1752 = vpack.c.b16 %v1738, %v1736
        %v1768 = vsel %vm1244, %v1696, 0
        %1770 = vmatprep.subr.bf16.mxu0 0
        %1771 = vmatpush1.bf16.msra.mxu0 0
        %1772 = vmatprep.subr.bf16.mxu0 %v1752
        %1773 = vmatpush1.bf16.msra.mxu0 %v1751
        %1774 = vmatprep.subr.bf16.mxu0 %v1750
        %1775 = vmatpush1.bf16.msra.mxu0 %v1749
        %1776 = vmatprep.subr.bf16.mxu0 %v1748
        %1777 = vmatpush1.bf16.msra.mxu0 %v1747
        %1778 = vmatprep.subr.bf16.mxu0 %v1746
        %1779 = vmatpush1.bf16.msra.mxu0 %v1745
        %1780 = vmatprep.subr.bf16.mxu0 %v1744
        %1781 = vmatpush1.bf16.msra.mxu0 %v1743
        %1782 = vmatprep.subr.bf16.mxu0 %v1742
        %1783 = vmatpush1.bf16.msra.mxu0 %v1741
        %1784 = vmatprep.subr.bf16.mxu0 %v1740
        %1785 = vmatpush1.bf16.msra.mxu0 %v1739
        %1786 = vmatprep.subr.bf16.mxu0 0
        %1787 = vmatpush2.bf16.msra.mxu0 0
        %1788 = vmatprep.subr.bf16.mxu0 0
        %1789 = vmatpush2.bf16.msra.mxu0 0
        %1790 = vmatprep.subr.bf16.mxu0 0
        %1791 = vmatpush2.bf16.msra.mxu0 0
        %1792 = vmatprep.subr.bf16.mxu0 0
        %1793 = vmatpush2.bf16.msra.mxu0 0
        %1794 = vmatprep.subr.bf16.mxu0 0
        %1795 = vmatpush2.bf16.msra.mxu0 0
        %1796 = vmatprep.subr.bf16.mxu0 0
        %1797 = vmatpush2.bf16.msra.mxu0 0
        %1798 = vmatprep.subr.bf16.mxu0 0
        %1799 = vmatpush2.bf16.msra.mxu0 0
        %1800 = vmatprep.subr.bf16.mxu0 0
        %1801 = vmatpush2.bf16.msra.mxu0 0
        %1802 = vmatprep.mubr.bf16.mxu0 0
        %1803 = vmatmul.mubr.bf16.gmra.mxu0 %v1768
        %v1804 = vpop.f32.mrf.mxu0
        %v1805 = vadd.f32 0.0, %v1804
        %v1806 = vpop.f32.mrf.mxu0
        %v1807 = vadd.f32 0.0, %v1806
        %v1808 = vpop.f32.mrf.mxu0
        %v1809 = vadd.f32 0.0, %v1808
        %v1810 = vpop.f32.mrf.mxu0
        %v1811 = vadd.f32 0.0, %v1810
        %1812 = vdwg.mxu0
        %v1813 = vadd.f32 %v1677, %v1805
        %v1814 = vadd.f32 %v1678, %v1807
        %v1815 = vadd.f32 %v1679, %v1809
        %v1816 = vadd.f32 %v1680, %v1811
        %v1817 = vld [vmem:[%s6] sm:$0x3]
        %v1819 = vlaneseq
        %v1820 = vshrl.u32 %v1819, 7
        %v1821 = vsub.s32 0, %v1820
        %v1822 = vrot.slane %v1817, %v1821
        %v1823 = vlaneseq
        %v1824 = vshrl.u32 %v1823, 7
        %v1825 = vsub.s32 1, %v1824
        %v1826 = vrot.slane %v1817, %v1825
        %v1829 = vadd.f32 %v1813, %v1822
        %v1830 = vadd.f32 %v1814, %v1826
        %v1831 = vadd.f32 %v1815, %v1822
        %v1832 = vadd.f32 %v1816, %v1826
        %v1833 = vmax.f32 %v1829, 0.0
        %v1834 = vmax.f32 %v1830, 0.0
        %v1835 = vmax.f32 %v1831, 0.0
        %v1836 = vmax.f32 %v1832, 0.0
        %v1841 = vrot.slane %v1833, 1
        %v1842 = vrot.slane %v1835, 1
        %v1843 = vsel %vm583, %v1841, %v1842
        %v1844 = vrot.slane %v1834, 1
        %v1845 = vrot.slane %v1836, 1
        %v1846 = vsel %vm583, %v1844, %v1845
        %v1851 = vmax.f32 %v1833, %v1843
        %v1852 = vmax.f32 %v1834, %v1846
        %v1853 = vmax.f32 %v1835, %v1842
        %v1854 = vmax.f32 %v1836, %v1845
        %v1855 = vpack.c.bf16 %v1853, %v1851
        %v1856 = vpack.c.bf16 %v1854, %v1852
        %v1857 = vld [vmem:[%s7] sm:$0x7]
        %vm1858 = vcmask 72704
        %v1860 = vsel %vm1858, %v1857, 0
        %vm1862 = vcmask 1043456
        %v1863 = vsel %vm1862, 4294967295, 65535
        %v1864 = vsel %vm898, %v1863, 0
        %v1866 = vand.u32 %v1855, %v1864
        %v1869 = vand.u32 %v1856, %v1864
        %1871 = vmatprep.subr.bf16.mxu0 0
        %1872 = vmatpush1.bf16.msra.mxu0 0
        %1873 = vmatprep.subr.bf16.mxu0 0
        %1874 = vmatpush1.bf16.msra.mxu0 0
        %1875 = vmatprep.subr.bf16.mxu0 0
        %1876 = vmatpush1.bf16.msra.mxu0 0
        %1877 = vmatprep.subr.bf16.mxu0 0
        %1878 = vmatpush1.bf16.msra.mxu0 0
        %1879 = vmatprep.subr.bf16.mxu0 0
        %1880 = vmatpush1.bf16.msra.mxu0 0
        %1881 = vmatprep.subr.bf16.mxu0 0
        %1882 = vmatpush1.bf16.msra.mxu0 0
        %1883 = vmatprep.subr.bf16.mxu0 0
        %1884 = vmatpush1.bf16.msra.mxu0 0
        %1885 = vmatprep.subr.bf16.mxu0 %v1869
        %1886 = vmatpush1.bf16.msra.mxu0 %v1866
        %1887 = vmatprep.subr.bf16.mxu0 0
        %1888 = vmatpush2.bf16.msra.mxu0 0
        %1889 = vmatprep.subr.bf16.mxu0 0
        %1890 = vmatpush2.bf16.msra.mxu0 0
        %1891 = vmatprep.subr.bf16.mxu0 0
        %1892 = vmatpush2.bf16.msra.mxu0 0
        %1893 = vmatprep.subr.bf16.mxu0 0
        %1894 = vmatpush2.bf16.msra.mxu0 0
        %1895 = vmatprep.subr.bf16.mxu0 0
        %1896 = vmatpush2.bf16.msra.mxu0 0
        %1897 = vmatprep.subr.bf16.mxu0 0
        %1898 = vmatpush2.bf16.msra.mxu0 0
        %1899 = vmatprep.subr.bf16.mxu0 0
        %1900 = vmatpush2.bf16.msra.mxu0 0
        %1901 = vmatprep.subr.bf16.mxu0 0
        %1902 = vmatpush2.bf16.msra.mxu0 0
        %1903 = vmatprep.mubr.bf16.mxu0 0
        %1904 = vmatmul.mubr.bf16.gmra.mxu0 %v1860
        %v1905 = vpop.f32.mrf.mxu0
        %v1906 = vadd.f32 0.0, %v1905
        %v1907 = vpop.f32.mrf.mxu0
        %v1908 = vadd.f32 0.0, %v1907
        %v1909 = vpop.f32.mrf.mxu0
        %v1910 = vpop.f32.mrf.mxu0
        %1911 = vdwg.mxu0
        %1914 = vrot.lane.b32.xlu0 %v1906, 127
        %v1915 = vpop.permute.xlu0 %1914
        %1916 = vrot.lane.b32.xlu0 %v1908, 127
        %v1917 = vpop.permute.xlu0 %1916
        %v1918 = vsel %vm962, %v1915, %v1917
        %v1921 = vmax.f32 %v1906, %v1918
        %v1922 = vmax.f32 %v1908, %v1917
        %v1923 = vpack.c.bf16 %v1921, %v1921
        %v1924 = vpack.c.bf16 %v1922, %v1922
        %v1925 = vld [vmem:[%s8] sm:$0xf]
        %v1926 = vld [vmem:[%s8 + $0x4] sm:$0xf]
        %v1927 = vld [vmem:[%s8 + $0x8] sm:$0xf]
        %v1928 = vld [vmem:[%s8 + $0xc] sm:$0xf]
        %v1929 = vld [vmem:[%s8 + $0x10] sm:$0xf]
        %v1930 = vld [vmem:[%s8 + $0x14] sm:$0xf]
        %v1931 = vld [vmem:[%s8 + $0x18] sm:$0xf]
        %v1932 = vld [vmem:[%s8 + $0x1c] sm:$0xf]
        %v1933 = vld [vmem:[%s8 + $0x20] sm:$0xf]
        %v1934 = vld [vmem:[%s8 + $0x24] sm:$0xf]
        %v1935 = vld [vmem:[%s8 + $0x28] sm:$0xf]
        %v1936 = vld [vmem:[%s8 + $0x2c] sm:$0xf]
        %v1937 = vld [vmem:[%s8 + $0x30] sm:$0xf]
        %v1938 = vld [vmem:[%s8 + $0x34] sm:$0xf]
        %v1939 = vld [vmem:[%s8 + $0x38] sm:$0xf]
        %v1940 = vld [vmem:[%s8 + $0x3c] sm:$0xf]
        %v1941 = vld [vmem:[%s8 + $0x40] sm:$0xf]
        %v1942 = vld [vmem:[%s8 + $0x44] sm:$0xf]
        %v1943 = vld [vmem:[%s8 + $0x48] sm:$0xf]
        %v1944 = vld [vmem:[%s8 + $0x4c] sm:$0xf]
        %v1965 = vunpack.c.l.b16 %v1925
        %v1966 = vunpack.c.l.b16 %v1926
        %v1967 = vunpack.c.l.b16 %v1927
        %v1968 = vunpack.c.l.b16 %v1928
        %v1969 = vunpack.c.l.b16 %v1929
        %v1970 = vunpack.c.l.b16 %v1930
        %v1971 = vunpack.c.l.b16 %v1931
        %v1972 = vunpack.c.l.b16 %v1932
        %v1973 = vunpack.c.l.b16 %v1933
        %v1974 = vunpack.c.l.b16 %v1934
        %v1975 = vunpack.c.l.b16 %v1935
        %v1976 = vunpack.c.l.b16 %v1936
        %v1977 = vunpack.c.l.b16 %v1937
        %v1978 = vunpack.c.l.b16 %v1938
        %v1979 = vunpack.c.l.b16 %v1939
        %v1980 = vunpack.c.l.b16 %v1940
        %v1981 = vunpack.c.l.b16 %v1941
        %v1982 = vunpack.c.l.b16 %v1942
        %v1983 = vunpack.c.l.b16 %v1943
        %v1984 = vunpack.c.l.b16 %v1944
        %v1985 = vpack.c.b16 %v1966, %v1965
        %v1986 = vpack.c.b16 %v1968, %v1967
        %v1987 = vpack.c.b16 %v1970, %v1969
        %v1988 = vpack.c.b16 %v1972, %v1971
        %v1989 = vpack.c.b16 %v1974, %v1973
        %v1990 = vpack.c.b16 %v1976, %v1975
        %v1991 = vpack.c.b16 %v1978, %v1977
        %v1992 = vpack.c.b16 %v1980, %v1979
        %v1993 = vpack.c.b16 %v1982, %v1981
        %v1994 = vpack.c.b16 %v1984, %v1983
        %vm2004 = vcmask 252928
        %v2006 = vsel %vm2004, %v1924, 0
        %v2009 = vand.u32 %v1994, %v1092
        %2011 = vmatprep.subr.bf16.mxu0 0
        %2012 = vmatpush1.bf16.msra.mxu0 %v1992
        %2013 = vmatprep.subr.bf16.mxu0 0
        %2014 = vmatpush1.bf16.msra.mxu0 %v1991
        %2015 = vmatprep.subr.bf16.mxu0 0
        %2016 = vmatpush1.bf16.msra.mxu0 %v1990
        %2017 = vmatprep.subr.bf16.mxu0 0
        %2018 = vmatpush1.bf16.msra.mxu0 %v1989
        %2019 = vmatprep.subr.bf16.mxu0 0
        %2020 = vmatpush1.bf16.msra.mxu0 %v1988
        %2021 = vmatprep.subr.bf16.mxu0 0
        %2022 = vmatpush1.bf16.msra.mxu0 %v1987
        %2023 = vmatprep.subr.bf16.mxu0 0
        %2024 = vmatpush1.bf16.msra.mxu0 %v1986
        %2025 = vmatprep.subr.bf16.mxu0 0
        %2026 = vmatpush1.bf16.msra.mxu0 %v1985
        %2027 = vmatprep.subr.bf16.mxu0 0
        %2028 = vmatpush2.bf16.msra.mxu0 0
        %2029 = vmatprep.subr.bf16.mxu0 0
        %2030 = vmatpush2.bf16.msra.mxu0 0
        %2031 = vmatprep.subr.bf16.mxu0 0
        %2032 = vmatpush2.bf16.msra.mxu0 0
        %2033 = vmatprep.subr.bf16.mxu0 0
        %2034 = vmatpush2.bf16.msra.mxu0 0
        %2035 = vmatprep.subr.bf16.mxu0 0
        %2036 = vmatpush2.bf16.msra.mxu0 0
        %2037 = vmatprep.subr.bf16.mxu0 0
        %2038 = vmatpush2.bf16.msra.mxu0 0
        %2039 = vmatprep.subr.bf16.mxu0 0
        %2040 = vmatpush2.bf16.msra.mxu0 %v2009
        %2041 = vmatprep.subr.bf16.mxu0 0
        %2042 = vmatpush2.bf16.msra.mxu0 %v1993
        %2043 = vmatprep.mubr.bf16.mxu0 %v2006
        %2044 = vmatmul.mubr.bf16.gmra.mxu0 %v1923
        %v2045 = vpop.f32.mrf.mxu0
        %v2046 = vadd.f32 0.0, %v2045
        %v2047 = vpop.f32.mrf.mxu0
        %v2048 = vpop.f32.mrf.mxu0
        %v2049 = vpop.f32.mrf.mxu0
        %2050 = vdwg.mxu0
        %v2051 = vpack.c.bf16 %v2046, %v2046
        %v2052 = vld [vmem:[%s9] sm:$0xff]
        %v2053 = vld [vmem:[%s9 + $0x8] sm:$0xff]
        %v2054 = vld [vmem:[%s9 + $0x10] sm:$0xf]
        %v2055 = vld [vmem:[%s9 + $0x14] sm:$0xff]
        %v2056 = vld [vmem:[%s9 + $0x1c] sm:$0xff]
        %v2057 = vld [vmem:[%s9 + $0x24] sm:$0xf]
        %v2058 = vld [vmem:[%s9 + $0x28] sm:$0xff]
        %v2059 = vld [vmem:[%s9 + $0x30] sm:$0xff]
        %v2060 = vld [vmem:[%s9 + $0x38] sm:$0xf]
        %v2061 = vld [vmem:[%s9 + $0x3c] sm:$0xff]
        %v2062 = vld [vmem:[%s9 + $0x44] sm:$0xff]
        %v2063 = vld [vmem:[%s9 + $0x4c] sm:$0xf]
        %v2064 = vld [vmem:[%s9 + $0x50] sm:$0xff]
        %v2065 = vld [vmem:[%s9 + $0x58] sm:$0xff]
        %v2066 = vld [vmem:[%s9 + $0x60] sm:$0xf]
        %v2067 = vld [vmem:[%s9 + $0x64] sm:$0xff]
        %v2068 = vld [vmem:[%s9 + $0x6c] sm:$0xff]
        %v2069 = vld [vmem:[%s9 + $0x74] sm:$0xf]
        %v2070 = vld [vmem:[%s9 + $0x78] sm:$0xff]
        %v2071 = vld [vmem:[%s9 + $0x80] sm:$0xff]
        %v2072 = vld [vmem:[%s9 + $0x88] sm:$0xf]
        %v2073 = vld [vmem:[%s9 + $0x8c] sm:$0xff]
        %v2074 = vld [vmem:[%s9 + $0x94] sm:$0xff]
        %v2075 = vld [vmem:[%s9 + $0x9c] sm:$0xf]
        %v2076 = vld [vmem:[%s9 + $0xa0] sm:$0xff]
        %v2077 = vld [vmem:[%s9 + $0xa8] sm:$0xff]
        %v2078 = vld [vmem:[%s9 + $0xb0] sm:$0xf]
        %v2079 = vld [vmem:[%s9 + $0xb4] sm:$0xff]
        %v2080 = vld [vmem:[%s9 + $0xbc] sm:$0xff]
        %v2081 = vld [vmem:[%s9 + $0xc4] sm:$0xf]
        %v2112 = vunpack.c.l.b16 %v2052
        %v2113 = vunpack.c.h.b16 %v2052
        %v2114 = vunpack.c.l.b16 %v2053
        %v2115 = vunpack.c.h.b16 %v2053
        %v2116 = vunpack.c.l.b16 %v2054
        %v2117 = vunpack.c.l.b16 %v2055
        %v2118 = vunpack.c.h.b16 %v2055
        %v2119 = vunpack.c.l.b16 %v2056
        %v2120 = vunpack.c.h.b16 %v2056
        %v2121 = vunpack.c.l.b16 %v2057
        %v2122 = vunpack.c.l.b16 %v2058
        %v2123 = vunpack.c.h.b16 %v2058
        %v2124 = vunpack.c.l.b16 %v2059
        %v2125 = vunpack.c.h.b16 %v2059
        %v2126 = vunpack.c.l.b16 %v2060
        %v2127 = vunpack.c.l.b16 %v2061
        %v2128 = vunpack.c.h.b16 %v2061
        %v2129 = vunpack.c.l.b16 %v2062
        %v2130 = vunpack.c.h.b16 %v2062
        %v2131 = vunpack.c.l.b16 %v2063
        %v2132 = vunpack.c.l.b16 %v2064
        %v2133 = vunpack.c.h.b16 %v2064
        %v2134 = vunpack.c.l.b16 %v2065
        %v2135 = vunpack.c.h.b16 %v2065
        %v2136 = vunpack.c.l.b16 %v2066
        %v2137 = vunpack.c.l.b16 %v2067
        %v2138 = vunpack.c.h.b16 %v2067
        %v2139 = vunpack.c.l.b16 %v2068
        %v2140 = vunpack.c.h.b16 %v2068
        %v2141 = vunpack.c.l.b16 %v2069
        %v2142 = vunpack.c.l.b16 %v2070
        %v2143 = vunpack.c.h.b16 %v2070
        %v2144 = vunpack.c.l.b16 %v2071
        %v2145 = vunpack.c.h.b16 %v2071
        %v2146 = vunpack.c.l.b16 %v2072
        %v2147 = vunpack.c.l.b16 %v2073
        %v2148 = vunpack.c.h.b16 %v2073
        %v2149 = vunpack.c.l.b16 %v2074
        %v2150 = vunpack.c.h.b16 %v2074
        %v2151 = vunpack.c.l.b16 %v2075
        %v2152 = vunpack.c.l.b16 %v2076
        %v2153 = vunpack.c.h.b16 %v2076
        %v2154 = vunpack.c.l.b16 %v2077
        %v2155 = vunpack.c.h.b16 %v2077
        %v2156 = vunpack.c.l.b16 %v2078
        %v2157 = vunpack.c.l.b16 %v2079
        %v2158 = vunpack.c.h.b16 %v2079
        %v2159 = vunpack.c.l.b16 %v2080
        %v2160 = vunpack.c.h.b16 %v2080
        %v2161 = vunpack.c.l.b16 %v2081
        %v2162 = vpack.c.b16 %v2117, %v2112
        %v2163 = vpack.c.b16 %v2118, %v2113
        %v2164 = vpack.c.b16 %v2119, %v2114
        %v2165 = vpack.c.b16 %v2120, %v2115
        %v2166 = vpack.c.b16 %v2121, %v2116
        %v2167 = vpack.c.b16 %v2127, %v2122
        %v2168 = vpack.c.b16 %v2128, %v2123
        %v2169 = vpack.c.b16 %v2129, %v2124
        %v2170 = vpack.c.b16 %v2130, %v2125
        %v2171 = vpack.c.b16 %v2131, %v2126
        %v2172 = vpack.c.b16 %v2137, %v2132
        %v2173 = vpack.c.b16 %v2138, %v2133
        %v2174 = vpack.c.b16 %v2139, %v2134
        %v2175 = vpack.c.b16 %v2140, %v2135
        %v2176 = vpack.c.b16 %v2141, %v2136
        %v2177 = vpack.c.b16 %v2147, %v2142
        %v2178 = vpack.c.b16 %v2148, %v2143
        %v2179 = vpack.c.b16 %v2149, %v2144
        %v2180 = vpack.c.b16 %v2150, %v2145
        %v2181 = vpack.c.b16 %v2151, %v2146
        %v2182 = vpack.c.b16 %v2157, %v2152
        %v2183 = vpack.c.b16 %v2158, %v2153
        %v2184 = vpack.c.b16 %v2159, %v2154
        %v2185 = vpack.c.b16 %v2160, %v2155
        %v2186 = vpack.c.b16 %v2161, %v2156
        %vm2212 = vcmask 654336
        %v2214 = vsel %vm2212, %v2051, 0
        %2216 = vmatprep.subr.bf16.mxu0 0
        %2217 = vmatpush1.bf16.msra.mxu0 0
        %2218 = vmatprep.subr.bf16.mxu0 0
        %2219 = vmatpush1.bf16.msra.mxu0 0
        %2220 = vmatprep.subr.bf16.mxu0 0
        %2221 = vmatpush1.bf16.msra.mxu0 0
        %2222 = vmatprep.subr.bf16.mxu0 %v2183
        %2223 = vmatpush1.bf16.msra.mxu0 %v2182
        %2224 = vmatprep.subr.bf16.mxu0 %v2178
        %2225 = vmatpush1.bf16.msra.mxu0 %v2177
        %2226 = vmatprep.subr.bf16.mxu0 %v2173
        %2227 = vmatpush1.bf16.msra.mxu0 %v2172
        %2228 = vmatprep.subr.bf16.mxu0 %v2168
        %2229 = vmatpush1.bf16.msra.mxu0 %v2167
        %2230 = vmatprep.subr.bf16.mxu0 %v2163
        %2231 = vmatpush1.bf16.msra.mxu0 %v2162
        %2232 = vmatprep.subr.bf16.mxu0 0
        %2233 = vmatpush2.bf16.msra.mxu0 0
        %2234 = vmatprep.subr.bf16.mxu0 0
        %2235 = vmatpush2.bf16.msra.mxu0 0
        %2236 = vmatprep.subr.bf16.mxu0 0
        %2237 = vmatpush2.bf16.msra.mxu0 0
        %2238 = vmatprep.subr.bf16.mxu0 0
        %2239 = vmatpush2.bf16.msra.mxu0 0
        %2240 = vmatprep.subr.bf16.mxu0 0
        %2241 = vmatpush2.bf16.msra.mxu0 0
        %2242 = vmatprep.subr.bf16.mxu0 0
        %2243 = vmatpush2.bf16.msra.mxu0 0
        %2244 = vmatprep.subr.bf16.mxu0 0
        %2245 = vmatpush2.bf16.msra.mxu0 0
        %2246 = vmatprep.subr.bf16.mxu0 0
        %2247 = vmatpush2.bf16.msra.mxu0 0
        %2248 = vmatprep.mubr.bf16.mxu0 0
        %2249 = vmatmul.mubr.bf16.gmra.mxu0 %v2214
        %v2250 = vpop.f32.mrf.mxu0
        %v2251 = vadd.f32 0.0, %v2250
        %v2252 = vpop.f32.mrf.mxu0
        %v2253 = vadd.f32 0.0, %v2252
        %v2254 = vpop.f32.mrf.mxu0
        %v2255 = vpop.f32.mrf.mxu0
        %2256 = vdwg.mxu0
        %2257 = vmatprep.subr.bf16.mxu0 0
        %2258 = vmatpush1.bf16.msra.mxu0 0
        %2259 = vmatprep.subr.bf16.mxu0 0
        %2260 = vmatpush1.bf16.msra.mxu0 0
        %2261 = vmatprep.subr.bf16.mxu0 0
        %2262 = vmatpush1.bf16.msra.mxu0 0
        %2263 = vmatprep.subr.bf16.mxu0 %v2185
        %2264 = vmatpush1.bf16.msra.mxu0 %v2184
        %2265 = vmatprep.subr.bf16.mxu0 %v2180
        %2266 = vmatpush1.bf16.msra.mxu0 %v2179
        %2267 = vmatprep.subr.bf16.mxu0 %v2175
        %2268 = vmatpush1.bf16.msra.mxu0 %v2174
        %2269 = vmatprep.subr.bf16.mxu0 %v2170
        %2270 = vmatpush1.bf16.msra.mxu0 %v2169
        %2271 = vmatprep.subr.bf16.mxu0 %v2165
        %2272 = vmatpush1.bf16.msra.mxu0 %v2164
        %2273 = vmatprep.subr.bf16.mxu0 0
        %2274 = vmatpush2.bf16.msra.mxu0 0
        %2275 = vmatprep.subr.bf16.mxu0 0
        %2276 = vmatpush2.bf16.msra.mxu0 0
        %2277 = vmatprep.subr.bf16.mxu0 0
        %2278 = vmatpush2.bf16.msra.mxu0 0
        %2279 = vmatprep.subr.bf16.mxu0 0
        %2280 = vmatpush2.bf16.msra.mxu0 0
        %2281 = vmatprep.subr.bf16.mxu0 0
        %2282 = vmatpush2.bf16.msra.mxu0 0
        %2283 = vmatprep.subr.bf16.mxu0 0
        %2284 = vmatpush2.bf16.msra.mxu0 0
        %2285 = vmatprep.subr.bf16.mxu0 0
        %2286 = vmatpush2.bf16.msra.mxu0 0
        %2287 = vmatprep.subr.bf16.mxu0 0
        %2288 = vmatpush2.bf16.msra.mxu0 0
        %2289 = vmatprep.mubr.bf16.mxu0 0
        %2290 = vmatmul.mubr.bf16.gmra.mxu0 %v2214
        %v2291 = vpop.f32.mrf.mxu0
        %v2292 = vadd.f32 0.0, %v2291
        %v2293 = vpop.f32.mrf.mxu0
        %v2294 = vadd.f32 0.0, %v2293
        %v2295 = vpop.f32.mrf.mxu0
        %v2296 = vpop.f32.mrf.mxu0
        %2297 = vdwg.mxu0
        %2298 = vmatprep.subr.bf16.mxu0 0
        %2299 = vmatpush1.bf16.msra.mxu0 0
        %2300 = vmatprep.subr.bf16.mxu0 0
        %2301 = vmatpush1.bf16.msra.mxu0 0
        %2302 = vmatprep.subr.bf16.mxu0 0
        %2303 = vmatpush1.bf16.msra.mxu0 0
        %2304 = vmatprep.subr.bf16.mxu0 0
        %2305 = vmatpush1.bf16.msra.mxu0 %v2186
        %2306 = vmatprep.subr.bf16.mxu0 0
        %2307 = vmatpush1.bf16.msra.mxu0 %v2181
        %2308 = vmatprep.subr.bf16.mxu0 0
        %2309 = vmatpush1.bf16.msra.mxu0 %v2176
        %2310 = vmatprep.subr.bf16.mxu0 0
        %2311 = vmatpush1.bf16.msra.mxu0 %v2171
        %2312 = vmatprep.subr.bf16.mxu0 0
        %2313 = vmatpush1.bf16.msra.mxu0 %v2166
        %2314 = vmatprep.subr.bf16.mxu0 0
        %2315 = vmatpush2.bf16.msra.mxu0 0
        %2316 = vmatprep.subr.bf16.mxu0 0
        %2317 = vmatpush2.bf16.msra.mxu0 0
        %2318 = vmatprep.subr.bf16.mxu0 0
        %2319 = vmatpush2.bf16.msra.mxu0 0
        %2320 = vmatprep.subr.bf16.mxu0 0
        %2321 = vmatpush2.bf16.msra.mxu0 0
        %2322 = vmatprep.subr.bf16.mxu0 0
        %2323 = vmatpush2.bf16.msra.mxu0 0
        %2324 = vmatprep.subr.bf16.mxu0 0
        %2325 = vmatpush2.bf16.msra.mxu0 0
        %2326 = vmatprep.subr.bf16.mxu0 0
        %2327 = vmatpush2.bf16.msra.mxu0 0
        %2328 = vmatprep.subr.bf16.mxu0 0
        %2329 = vmatpush2.bf16.msra.mxu0 0
        %2330 = vmatprep.mubr.bf16.mxu0 0
        %2331 = vmatmul.mubr.bf16.gmra.mxu0 %v2214
        %v2332 = vpop.f32.mrf.mxu0
        %v2333 = vadd.f32 0.0, %v2332
        %v2334 = vpop.f32.mrf.mxu0
        %v2335 = vpop.f32.mrf.mxu0
        %v2336 = vpop.f32.mrf.mxu0
        %2337 = vdwg.mxu0
        %v2338 = vld [vmem:[%s10] sm:$0x1]
        %v2339 = vadd.f32 %v2338, %v2251
        %v2342 = vunpack.c.l.s4 1966171168
        %v2343 = vunpack.c.0.s8 %v2342
        %v2344 = vlaneseq
        %v2345 = vshrl.u32 %v2344, 7
        %v2346 = vsub.s32 %v2343, %v2345
        %v2347 = vrot.slane %v2253, %v2346
        %v2348 = vcombine.high %v2347, %v2347
        %v2350 = vunpack.c.l.s4 1966171168
        %v2351 = vunpack.c.0.s8 %v2350
        %v2352 = vlaneseq
        %v2353 = vshrl.u32 %v2352, 7
        %v2354 = vsub.s32 %v2351, %v2353
        %v2355 = vrot.slane %v2348, %v2354
        %v2357 = vadd.f32 %v2339, %v2355
        %v2360 = vunpack.c.l.s4 1966171168
        %v2361 = vunpack.c.0.s8 %v2360
        %v2362 = vlaneseq
        %v2363 = vshrl.u32 %v2362, 7
        %v2364 = vsub.s32 %v2361, %v2363
        %v2365 = vrot.slane %v2292, %v2364
        %v2367 = vunpack.c.l.s4 1966171168
        %v2368 = vunpack.c.0.s8 %v2367
        %v2369 = vlaneseq
        %v2370 = vshrl.u32 %v2369, 7
        %v2371 = vsub.s32 %v2368, %v2370
        %v2372 = vrot.slane %v2365, %v2371
        %v2373 = vcombine.high %v2372, %v2372
        %v2375 = vadd.f32 %v2357, %v2373
        %v2378 = vunpack.c.l.s4 1966171168
        %v2379 = vunpack.c.0.s8 %v2378
        %v2380 = vlaneseq
        %v2381 = vshrl.u32 %v2380, 7
        %v2382 = vsub.s32 %v2379, %v2381
        %v2383 = vrot.slane %v2294, %v2382
        %v2384 = vcombine.high %v2383, %v2383
        %v2386 = vunpack.c.l.s4 1966171168
        %v2387 = vunpack.c.0.s8 %v2386
        %v2388 = vlaneseq
        %v2389 = vshrl.u32 %v2388, 7
        %v2390 = vsub.s32 %v2387, %v2389
        %v2391 = vrot.slane %v2384, %v2390
        %v2392 = vcombine.high %v2391, %v2391
        %v2394 = vadd.f32 %v2375, %v2392
        %v2396 = vcombine.high %v2333, %v2333
        %v2398 = vunpack.c.l.s4 1966171168
        %v2399 = vunpack.c.0.s8 %v2398
        %v2400 = vlaneseq
        %v2401 = vshrl.u32 %v2400, 7
        %v2402 = vsub.s32 %v2399, %v2401
        %v2403 = vrot.slane %v2396, %v2402
        %v2405 = vunpack.c.l.s4 1966171168
        %v2406 = vunpack.c.0.s8 %v2405
        %v2407 = vlaneseq
        %v2408 = vshrl.u32 %v2407, 7
        %v2409 = vsub.s32 %v2406, %v2408
        %v2410 = vrot.slane %v2403, %v2409
        %v2412 = vadd.f32 %v2394, %v2410
        %v2413 = vmax.f32 %v2412, 0.0
        %v2414 = vpack.c.bf16 %v2413, %v2413
        %v2415 = vld [vmem:[%s11] sm:$0xf]
        %v2416 = vld [vmem:[%s11 + $0x4] sm:$0xf]
        %v2417 = vld [vmem:[%s11 + $0x8] sm:$0xf]
        %v2418 = vld [vmem:[%s11 + $0xc] sm:$0xf]
        %v2419 = vld [vmem:[%s11 + $0x10] sm:$0xf]
        %v2420 = vld [vmem:[%s11 + $0x14] sm:$0xf]
        %v2421 = vld [vmem:[%s11 + $0x18] sm:$0xf]
        %v2422 = vld [vmem:[%s11 + $0x1c] sm:$0xf]
        %v2423 = vld [vmem:[%s11 + $0x20] sm:$0xf]
        %v2424 = vld [vmem:[%s11 + $0x24] sm:$0xf]
        %v2425 = vld [vmem:[%s11 + $0x28] sm:$0xf]
        %v2426 = vld [vmem:[%s11 + $0x2c] sm:$0xf]
        %v2427 = vld [vmem:[%s11 + $0x30] sm:$0xf]
        %v2428 = vld [vmem:[%s11 + $0x34] sm:$0xf]
        %v2429 = vld [vmem:[%s11 + $0x38] sm:$0xf]
        %v2430 = vld [vmem:[%s11 + $0x3c] sm:$0xf]
        %v2431 = vld [vmem:[%s12] sm:$0x1]
        %v2448 = vunpack.c.l.b16 %v2415
        %v2449 = vunpack.c.l.b16 %v2416
        %v2450 = vunpack.c.l.b16 %v2417
        %v2451 = vunpack.c.l.b16 %v2418
        %v2452 = vunpack.c.l.b16 %v2419
        %v2453 = vunpack.c.l.b16 %v2420
        %v2454 = vunpack.c.l.b16 %v2421
        %v2455 = vunpack.c.l.b16 %v2422
        %v2456 = vunpack.c.l.b16 %v2423
        %v2457 = vunpack.c.l.b16 %v2424
        %v2458 = vunpack.c.l.b16 %v2425
        %v2459 = vunpack.c.l.b16 %v2426
        %v2460 = vunpack.c.l.b16 %v2427
        %v2461 = vunpack.c.l.b16 %v2428
        %v2462 = vunpack.c.l.b16 %v2429
        %v2463 = vunpack.c.l.b16 %v2430
        %v2464 = vpack.c.b16 %v2449, %v2448
        %v2465 = vpack.c.b16 %v2451, %v2450
        %v2466 = vpack.c.b16 %v2453, %v2452
        %v2467 = vpack.c.b16 %v2455, %v2454
        %v2468 = vpack.c.b16 %v2457, %v2456
        %v2469 = vpack.c.b16 %v2459, %v2458
        %v2470 = vpack.c.b16 %v2461, %v2460
        %v2471 = vpack.c.b16 %v2463, %v2462
        %2480 = vmatprep.subr.bf16.mxu0 0
        %2481 = vmatpush1.bf16.msra.mxu0 %v2471
        %2482 = vmatprep.subr.bf16.mxu0 0
        %2483 = vmatpush1.bf16.msra.mxu0 %v2470
        %2484 = vmatprep.subr.bf16.mxu0 0
        %2485 = vmatpush1.bf16.msra.mxu0 %v2469
        %2486 = vmatprep.subr.bf16.mxu0 0
        %2487 = vmatpush1.bf16.msra.mxu0 %v2468
        %2488 = vmatprep.subr.bf16.mxu0 0
        %2489 = vmatpush1.bf16.msra.mxu0 %v2467
        %2490 = vmatprep.subr.bf16.mxu0 0
        %2491 = vmatpush1.bf16.msra.mxu0 %v2466
        %2492 = vmatprep.subr.bf16.mxu0 0
        %2493 = vmatpush1.bf16.msra.mxu0 %v2465
        %2494 = vmatprep.subr.bf16.mxu0 0
        %2495 = vmatpush1.bf16.msra.mxu0 %v2464
        %2496 = vmatprep.subr.bf16.mxu0 0
        %2497 = vmatpush2.bf16.msra.mxu0 0
        %2498 = vmatprep.subr.bf16.mxu0 0
        %2499 = vmatpush2.bf16.msra.mxu0 0
        %2500 = vmatprep.subr.bf16.mxu0 0
        %2501 = vmatpush2.bf16.msra.mxu0 0
        %2502 = vmatprep.subr.bf16.mxu0 0
        %2503 = vmatpush2.bf16.msra.mxu0 0
        %2504 = vmatprep.subr.bf16.mxu0 0
        %2505 = vmatpush2.bf16.msra.mxu0 0
        %2506 = vmatprep.subr.bf16.mxu0 0
        %2507 = vmatpush2.bf16.msra.mxu0 0
        %2508 = vmatprep.subr.bf16.mxu0 0
        %2509 = vmatpush2.bf16.msra.mxu0 0
        %2510 = vmatprep.subr.bf16.mxu0 0
        %2511 = vmatpush2.bf16.msra.mxu0 0
        %2512 = vmatprep.mubr.bf16.mxu0 0
        %2513 = vmatmul.mubr.bf16.gmra.mxu0 %v2414
        %v2514 = vpop.f32.mrf.mxu0
        %v2515 = vadd.f32 %v2431, %v2514
        %v2516 = vpop.f32.mrf.mxu0
        %v2517 = vpop.f32.mrf.mxu0
        %v2518 = vpop.f32.mrf.mxu0
        %2519 = vdwg.mxu0
        %v2520 = vmax.f32 %v2515, 0.0
        %v2521 = vpack.c.bf16 %v2520, %v2520
        %v2522 = vld [vmem:[%s13] sm:$0xf]
        %v2523 = vld [vmem:[%s13 + $0x4] sm:$0xf]
        %v2524 = vld [vmem:[%s13 + $0x8] sm:$0xf]
        %v2525 = vld [vmem:[%s13 + $0xc] sm:$0xf]
        %v2526 = vld [vmem:[%s13 + $0x10] sm:$0xf]
        %v2527 = vld [vmem:[%s13 + $0x14] sm:$0xf]
        %v2528 = vld [vmem:[%s13 + $0x18] sm:$0xf]
        %v2529 = vld [vmem:[%s13 + $0x1c] sm:$0xf]
        %v2530 = vld [vmem:[%s14] sm:$0x1]
        %v2539 = vunpack.c.l.b16 %v2522
        %v2540 = vunpack.c.l.b16 %v2523
        %v2541 = vunpack.c.l.b16 %v2524
        %v2542 = vunpack.c.l.b16 %v2525
        %v2543 = vunpack.c.l.b16 %v2526
        %v2544 = vunpack.c.l.b16 %v2527
        %v2545 = vunpack.c.l.b16 %v2528
        %v2546 = vunpack.c.l.b16 %v2529
        %v2547 = vpack.c.b16 %v2540, %v2539
        %v2548 = vpack.c.b16 %v2542, %v2541
        %v2549 = vpack.c.b16 %v2544, %v2543
        %v2550 = vpack.c.b16 %v2546, %v2545
        %vm2555 = vcmask 523264
        %v2557 = vsel %vm2555, %v2521, 0
        %2559 = vmatprep.subr.bf16.mxu0 0
        %2560 = vmatpush1.bf16.msra.mxu0 0
        %2561 = vmatprep.subr.bf16.mxu0 0
        %2562 = vmatpush1.bf16.msra.mxu0 0
        %2563 = vmatprep.subr.bf16.mxu0 0
        %2564 = vmatpush1.bf16.msra.mxu0 0
        %2565 = vmatprep.subr.bf16.mxu0 0
        %2566 = vmatpush1.bf16.msra.mxu0 0
        %2567 = vmatprep.subr.bf16.mxu0 0
        %2568 = vmatpush1.bf16.msra.mxu0 %v2550
        %2569 = vmatprep.subr.bf16.mxu0 0
        %2570 = vmatpush1.bf16.msra.mxu0 %v2549
        %2571 = vmatprep.subr.bf16.mxu0 0
        %2572 = vmatpush1.bf16.msra.mxu0 %v2548
        %2573 = vmatprep.subr.bf16.mxu0 0
        %2574 = vmatpush1.bf16.msra.mxu0 %v2547
        %2575 = vmatprep.subr.bf16.mxu0 0
        %2576 = vmatpush2.bf16.msra.mxu0 0
        %2577 = vmatprep.subr.bf16.mxu0 0
        %2578 = vmatpush2.bf16.msra.mxu0 0
        %2579 = vmatprep.subr.bf16.mxu0 0
        %2580 = vmatpush2.bf16.msra.mxu0 0
        %2581 = vmatprep.subr.bf16.mxu0 0
        %2582 = vmatpush2.bf16.msra.mxu0 0
        %2583 = vmatprep.subr.bf16.mxu0 0
        %2584 = vmatpush2.bf16.msra.mxu0 0
        %2585 = vmatprep.subr.bf16.mxu0 0
        %2586 = vmatpush2.bf16.msra.mxu0 0
        %2587 = vmatprep.subr.bf16.mxu0 0
        %2588 = vmatpush2.bf16.msra.mxu0 0
        %2589 = vmatprep.subr.bf16.mxu0 0
        %2590 = vmatpush2.bf16.msra.mxu0 0
        %2591 = vmatprep.mubr.bf16.mxu0 0
        %2592 = vmatmul.mubr.bf16.gmra.mxu0 %v2557
        %v2593 = vpop.f32.mrf.mxu0
        %v2594 = vadd.f32 %v2530, %v2593
        %v2595 = vpop.f32.mrf.mxu0
        %v2596 = vpop.f32.mrf.mxu0
        %v2597 = vpop.f32.mrf.mxu0
        %2598 = vdwg.mxu0
        %vm2599 = vcmask 73728
        %v2600 = vsel %vm2599, %v2594, -inf
        %2601 = vmax.xlane.f32.xlu0 %v2600
        %v2602 = vpop.xlane.xlu0 %2601
        %v2603 = vsub.f32 %v2594, %v2602
        %v2604 = vmul.f32 %v2603, 1.442695
        %v2605 = vpow.pop %v2604
        %v2606 = vsel %vm2599, %v2605, 0.0
        %2607 = vadd.xlane.f32.xlu0 %v2606
        %v2608 = vpop.xlane.xlu0 %2607
        %v2609 = vlog2.pop %v2608
        %v2610 = vmul.f32 %v2609, 0.6931472
        %v2611 = vsub.f32 %v2603, %v2610
        %2612 = vst.msk [vmem:[%s486] sm:$0x1] %vm2599, %v2611
        %s2613 = sand.u32 %s357, 1
        %s2614 = scalar_lea.sflag [#allocation4], %s2613
        %s2615 = sand.u32 %s357, 1
        %s2616 = scalar_lea.vmem [#allocation3], %s2615
        // Predicated region
        $region81: #{lenet5_forward.1} parent=79 // pred_check
          %p2617 = pneg %p367
        $region82: #{lenet5_forward.1} parent=79 // pred_check_branch
          %2619 = sbr.rel (%p2617) target = $region84
        $region83: #{lenet5_forward.1} parent=79 // pred_region
          %s2621 = ssub.s32 16, 16
          %2622 = vsyncadd %s2614, %s2621
          %s2623 = smul.addr %s29, 16
          %s2624 = scalar_lea.hbm %s15, %s2623
          %s2626 = sshll.u32 %s2616, 4
          %s2627 = int_to_ptr.vmem [resolvable:$true] %s2626
          %2629 = dma.vmem_to_hbm [thread:$0]  %s2627, 16, %s2624, %s2614
        $region84: #{lenet5_forward.1} parent=79 // pred_fallthru
          _
      $region80: #{lenet5_forward.1} parent=5 // pred_fallthru
        _
      %p2630 = scmp.le.s32.totalorder 2, %s24
      // Predicated region
      $region85: #{lenet5_forward.1} parent=5 // pred_check
        %p2631 = pneg %p2630
      $region86: #{lenet5_forward.1} parent=5 // pred_check_branch
        %2633 = sbr.rel (%p2631) target = $region88
      $region87: #{lenet5_forward.1} parent=5 // pred_region
        %s2634 = ssub.s32 %s24, 2
        // Predicated region
        $region89: #{lenet5_forward.1} parent=87 // pred_check
          %p2635 = pneg %p373
        $region90: #{lenet5_forward.1} parent=87 // pred_check_branch
          %2637 = sbr.rel (%p2635) target = $region92
        $region91: #{lenet5_forward.1} parent=87 // pred_region
          %s2638 = sand.u32 %s358, 1
          %s2639 = scalar_lea.sflag [#allocation4], %s2638
          %s2640 = sand.u32 %s358, 1
          %s2641 = scalar_lea.vmem [#allocation3], %s2640
          %2642 = dma.done %s2639, 16
        $region92: #{lenet5_forward.1} parent=87 // pred_fallthru
          _
      $region88: #{lenet5_forward.1} parent=5 // pred_fallthru
        _
    $region6: #{lenet5_forward.1} parent=1 // loop_footer
      %s28 = sadd.s32 1, %s24
    $region7: #{lenet5_forward.1} parent=1 // loop_footer_branch
      %23 = sbr.rel target = $region3
    $region8: #{lenet5_forward.1} parent=1 // loop_exit
      _
    %2643 = vsyncpa [#allocation4], 1
    %s2644 = scalar_lea.sflag [#allocation4], 1
    %2645 = vsyncpa %s2644, 1

</llo_original>
